<compile_context>
chip_gen: v5e
topology: v5e:2x2
jax: 0.10.0
libtpu: 0.0.40
codegen_flags: <defaults>
</compile_context>

<pallas_src>
import functools
import math

import jax
import jax.numpy as jnp
from jax import lax
from jax.experimental import pallas as pl
from jax.experimental.pallas import tpu as pltpu


def _round_up(x, m):
    return (x + m - 1) // m * m


def adjconv_kernel(x_row_ref, x_col_ref, w1_ref, w2_ref, wf_ref, adj_ref,
                   h_ref, h4_ref,
                   row_h3, row_h4l, row_hs, acc_pos, acc_neg,
                   *, compute_dtype):
    """One (row-tile i, column-tile k) step; grid = (Nr/tm, Nc/tk)."""
    k = pl.program_id(1)
    nk = pl.num_programs(1)

    # ---- init for this row tile: project once, zero the accumulators -------
    @pl.when(k == 0)
    def _init():
        x_i = x_row_ref[...]
        row_h3[...] = jnp.dot(x_i, w1_ref[...], preferred_element_type=jnp.float32)
        row_h4l[...] = jnp.dot(x_i, w2_ref[...], preferred_element_type=jnp.float32)
        row_hs[...] = jnp.dot(x_i, wf_ref[...], preferred_element_type=jnp.float32)
        acc_pos[...] = jnp.zeros_like(acc_pos)
        acc_neg[...] = jnp.zeros_like(acc_neg)

    # ---- column-tile projections (cheap recompute, K = padded C_in) --------
    x_k = x_col_ref[...]
    h3_k = jnp.dot(x_k, w1_ref[...], preferred_element_type=jnp.float32)
    h4l_k = jnp.dot(x_k, w2_ref[...], preferred_element_type=jnp.float32)

    cdt = compute_dtype
    h3_i = row_h3[...].astype(cdt)
    h4l_i = row_h4l[...].astype(cdt)
    h3_k_c = h3_k.astype(cdt)
    h4l_k_c = h4l_k.astype(cdt)

    # Contract last dim of both operands ("A @ B.T") -> no transposed operand
    # is materialized; both logit tiles come straight off the MXU.
    contract_last = (((1,), (1,)), ((), ()))
    s_raw = lax.dot_general(h3_i, h4l_k_c, contract_last,
                            preferred_element_type=jnp.float32)     # [tm, tk]
    # Transposed logits via a second (cheap, K=C) MXU matmul instead of an
    # XLU transpose of an [N, N] tile:
    #   sigmoid(h4l @ h3.T) == (1 - sigmoid(-(h3 @ h4l.T))).T
    s_raw_t = lax.dot_general(h4l_i, h3_k_c, contract_last,
                              preferred_element_type=jnp.float32)   # [tm, tk]

    adj_t = adj_ref[...].astype(jnp.float32)
    posx = jax.nn.sigmoid(-s_raw) * adj_t      # element-wise kept in f32 (v5e-safe)
    negx = jax.nn.sigmoid(s_raw_t) * adj_t     # == (1 - s).T * adj   (tile)

    acc_pos[...] += jnp.dot(posx.astype(cdt), h3_k_c,
                            preferred_element_type=jnp.float32)
    acc_neg[...] += jnp.dot(negx.astype(cdt), h4l_k_c,
                            preferred_element_type=jnp.float32)

    # ---- finalize this row tile --------------------------------------------
    @pl.when(k == nk - 1)
    def _finalize():
        h4_out = row_hs[...] + acc_neg[...]
        # hs cancels exactly: h = hs + posx@h3 - (hs + negx@h4l)
        h_out = acc_pos[...] - acc_neg[...]
        h_ref[...] = h_out.astype(h_ref.dtype)
        h4_ref[...] = h4_out.astype(h4_ref.dtype)


def adjconv_forward(h1, w1_t, w2_t, wf_t, adj, *, tm=256, tk=512,
                    compute_dtype=jnp.float32, adj_dtype=jnp.bfloat16,
                    out_dtype=jnp.float32):
    """ADJConv forward.

    h1  : [N, C_in]       node features
    w*_t: [C_in, C_out]   linear weights pre-transposed (kernel does x @ W)
    adj : [N, N]          adjacency (binary adjacency is exact in bf16; pass
                          adj_dtype=jnp.float32 for weighted/normalized adj)
    Returns (h, h4), each [N, C_out].
    """
    N, C_in = h1.shape
    C_out = w1_t.shape[1]
    assert adj.shape == (N, N)
    assert tm % 8 == 0 and tk % 128 == 0, "tm multiple of 8, tk multiple of 128"

    f32 = jnp.float32

    # Lane-dense channel padding (exact: zero channels contribute zero).
    C_in_p = _round_up(C_in, 128)
    C_out_p = _round_up(C_out, 128)

    # Rectangular node padding: rows to a multiple of tm, columns to a multiple
    # of tk. Padded columns are gated off by adj = 0 (exact); padded rows are
    # sliced away at the end.
    N_row = _round_up(N, tm)
    N_col = _round_up(N, tk)

    x_row = jnp.zeros((N_row, C_in_p), f32).at[:N, :C_in].set(h1.astype(f32))
    x_col = jnp.zeros((N_col, C_in_p), f32).at[:N, :C_in].set(h1.astype(f32))
    adj_p = jnp.zeros((N_row, N_col), adj_dtype).at[:N, :N].set(
        adj.astype(adj_dtype))

    def pad_w(w):
        return jnp.zeros((C_in_p, C_out_p), f32).at[:C_in, :C_out].set(
            w.astype(f32))

    w1_p, w2_p, wf_p = pad_w(w1_t), pad_w(w2_t), pad_w(wf_t)

    grid = (N_row // tm, N_col // tk)

    adj_bytes = N_row * N_col * jnp.dtype(adj_dtype).itemsize
    cost = pl.CostEstimate(
        flops=8 * N_row * N_col * C_out_p
        + 4 * (N_row // tm) * N_col * C_in_p * C_out_p
        + 6 * N_row * C_in_p * C_out_p,
        transcendentals=2 * N_row * N_col,
        bytes_accessed=adj_bytes
        + N_row * C_in_p * 4 + (N_row // tm) * N_col * C_in_p * 4
        + 3 * C_in_p * C_out_p * 4 + 2 * N_row * C_out_p * 4,
    )

    kernel = functools.partial(adjconv_kernel, compute_dtype=compute_dtype)

    h_p, h4_p = pl.pallas_call(
        kernel,
        out_shape=(jax.ShapeDtypeStruct((N_row, C_out_p), out_dtype),
                   jax.ShapeDtypeStruct((N_row, C_out_p), out_dtype)),
        grid_spec=pltpu.PrefetchScalarGridSpec(
            num_scalar_prefetch=0,
            grid=grid,
            in_specs=[
                pl.BlockSpec((tm, C_in_p), lambda i, k: (i, 0)),      # h1 rows
                pl.BlockSpec((tk, C_in_p), lambda i, k: (k, 0)),      # h1 cols
                pl.BlockSpec((C_in_p, C_out_p), lambda i, k: (0, 0)),  # W1
                pl.BlockSpec((C_in_p, C_out_p), lambda i, k: (0, 0)),  # W2
                pl.BlockSpec((C_in_p, C_out_p), lambda i, k: (0, 0)),  # Wf
                pl.BlockSpec((tm, tk), lambda i, k: (i, k)),           # adj tile
            ],
            out_specs=[
                pl.BlockSpec((tm, C_out_p), lambda i, k: (i, 0)),      # h
                pl.BlockSpec((tm, C_out_p), lambda i, k: (i, 0)),      # h4
            ],
            scratch_shapes=[
                pltpu.VMEM((tm, C_out_p), jnp.float32),   # row_h3
                pltpu.VMEM((tm, C_out_p), jnp.float32),   # row_h4l
                pltpu.VMEM((tm, C_out_p), jnp.float32),   # row_hs
                pltpu.VMEM((tm, C_out_p), jnp.float32),   # acc_pos
                pltpu.VMEM((tm, C_out_p), jnp.float32),   # acc_neg
            ]),
        compiler_params=pltpu.CompilerParams(
            dimension_semantics=("parallel", "arbitrary"),
            vmem_limit_bytes=64 << 20),
        cost_estimate=cost,
    )(x_row, x_col, w1_p, w2_p, wf_p, adj_p)

    return h_p[:N, :C_out], h4_p[:N, :C_out]


# ----------------------------------------------------------------------------
# Pure-JAX reference (mirrors the PyTorch module line-by-line).
# ----------------------------------------------------------------------------
def adjconv_reference(h1, w1_t, w2_t, wf_t, adj):
    h3 = h1 @ w1_t
    h4l = h1 @ w2_t
    hs = h1 @ wf_t
    s = jax.nn.sigmoid(-(h3 @ h4l.T))
    posx = s * adj
    negx = (1.0 - s).T * adj
    h4 = hs + negx @ h4l
    h = hs + posx @ h3 - h4
    return h, h4


def _init_linear_weight(key, in_features, out_features):
    # PyTorch nn.Linear.reset_parameters(): kaiming_uniform(a=sqrt(5))
    # => uniform(-1/sqrt(fan_in), 1/sqrt(fan_in)); stored as [C_in, C_out].
    bound = 1.0 / math.sqrt(in_features)
    return jax.random.uniform(key, (in_features, out_features), jnp.float32,
                              -bound, bound)


if __name__ == "__main__":
    key = jax.random.PRNGKey(0)
    k_h, k_adj, k_w1, k_w2, k_wf = jax.random.split(key, 5)

    N = 200          # deliberately not a multiple of the tile size
    C_in = 32        # in_channels
    C_out = 32       # out_channels

    h1 = jax.random.normal(k_h, (N, C_in), jnp.float32)
    # dense symmetric-ish binary adjacency with self loops (synthetic)
    adj_raw = (jax.random.uniform(k_adj, (N, N)) < 0.1).astype(jnp.float32)
    adj = jnp.clip(adj_raw + adj_raw.T + jnp.eye(N, dtype=jnp.float32), 0.0, 1.0)

    w1_t = _init_linear_weight(k_w1, C_in, C_out)   # lin1
    w2_t = _init_linear_weight(k_w2, C_in, C_out)   # lin2
    wf_t = _init_linear_weight(k_wf, C_in, C_out)   # floop

    h_ref, h4_ref = adjconv_reference(h1, w1_t, w2_t, wf_t, adj)

    # f32 MXU path (faithful numerics); small tiles for the toy problem size.
    h_out, h4_out = adjconv_forward(h1, w1_t, w2_t, wf_t, adj,
                                    tm=128, tk=128,
                                    compute_dtype=jnp.float32)
    jax.block_until_ready((h_out, h4_out))
    assert jnp.allclose(h_out, h_ref, atol=2e-4, rtol=2e-4)
    assert jnp.allclose(h4_out, h4_ref, atol=2e-4, rtol=2e-4)

    # bf16 MXU-operand path (peak throughput on v6e/v7x); looser tolerance.
    h_bf, h4_bf = adjconv_forward(h1, w1_t, w2_t, wf_t, adj,
                                  tm=128, tk=256,
                                  compute_dtype=jnp.bfloat16)
    jax.block_until_ready((h_bf, h4_bf))
    assert jnp.allclose(h_bf, h_ref, atol=1e-1, rtol=1e-1)
    assert jnp.allclose(h4_bf, h4_ref, atol=1e-1, rtol=1e-1)

    print("KERNEL_OK")
</pallas_src>

<mosaic_0001>
module attributes {stable_mosaic.version = 11 : i64} {
  func.func @adjconv_kernel(%arg0: i32, %arg1: i32, %arg2: memref<128x128xf32, #tpu.memory_space<vmem>>, %arg3: memref<128x128xf32, #tpu.memory_space<vmem>>, %arg4: memref<128x128xf32, #tpu.memory_space<vmem>>, %arg5: memref<128x128xf32, #tpu.memory_space<vmem>>, %arg6: memref<128x128xf32, #tpu.memory_space<vmem>>, %arg7: memref<128x128xbf16, #tpu.memory_space<vmem>>, %arg8: memref<128x128xf32, #tpu.memory_space<vmem>>, %arg9: memref<128x128xf32, #tpu.memory_space<vmem>>, %arg10: memref<128x128xf32, #tpu.memory_space<vmem>>, %arg11: memref<128x128xf32, #tpu.memory_space<vmem>>, %arg12: memref<128x128xf32, #tpu.memory_space<vmem>>, %arg13: memref<128x128xf32, #tpu.memory_space<vmem>>, %arg14: memref<128x128xf32, #tpu.memory_space<vmem>>) attributes {dimension_semantics = [#tpu.dimension_semantics<parallel>, #tpu.dimension_semantics<arbitrary>], iteration_bounds = array<i64: 2, 2>, scalar_prefetch = 0 : i64, scratch_operands = 5 : i64, tpu.core_type = #tpu.core_type<tc>, window_params = [{transform_indices = @transform_0, window_bounds = array<i64: 128, 128>}, {transform_indices = @transform_1, window_bounds = array<i64: 128, 128>}, {pipeline_mode = #tpu.pipeline_mode<synchronous>, transform_indices = @transform_2, window_bounds = array<i64: 128, 128>}, {pipeline_mode = #tpu.pipeline_mode<synchronous>, transform_indices = @transform_3, window_bounds = array<i64: 128, 128>}, {pipeline_mode = #tpu.pipeline_mode<synchronous>, transform_indices = @transform_4, window_bounds = array<i64: 128, 128>}, {transform_indices = @transform_5, window_bounds = array<i64: 128, 128>}, {transform_indices = @transform_6, window_bounds = array<i64: 128, 128>}, {transform_indices = @transform_7, window_bounds = array<i64: 128, 128>}]} {
    %c0_i32 = arith.constant 0 : i32
    %0 = arith.cmpi eq, %arg1, %c0_i32 : i32
    %1 = arith.extui %0 : i1 to i32
    %c0_i32_0 = arith.constant 0 : i32
    %2 = arith.cmpi ne, %1, %c0_i32_0 : i32
    scf.if %2 {
      %c0_29 = arith.constant 0 : index
      %c0_30 = arith.constant 0 : index
      %39 = vector.load %arg2[%c0_29, %c0_30] : memref<128x128xf32, #tpu.memory_space<vmem>>, vector<128x128xf32>
      %c0_31 = arith.constant 0 : index
      %c0_32 = arith.constant 0 : index
      %40 = vector.load %arg4[%c0_31, %c0_32] : memref<128x128xf32, #tpu.memory_space<vmem>>, vector<128x128xf32>
      %cst_33 = arith.constant dense<0.000000e+00> : vector<128x128xf32>
      %41 = tpu.matmul %39, %40, %cst_33 {dimension_numbers = #tpu.dot_dimension_numbers<[1], [0], [0], [1], [0, 0, 1, 1], [], []>} : vector<128x128xf32>, vector<128x128xf32>, vector<128x128xf32> -> vector<128x128xf32>
      %c0_34 = arith.constant 0 : index
      %c0_35 = arith.constant 0 : index
      %42 = vector.load %arg10[%c0_34, %c0_35] : memref<128x128xf32, #tpu.memory_space<vmem>>, vector<128x128xf32>
      tpu.vector_store %arg10[%c0_34, %c0_35], %41 {strides = array<i32>} : memref<128x128xf32, #tpu.memory_space<vmem>>, vector<128x128xf32>,
      %c0_36 = arith.constant 0 : index
      %c0_37 = arith.constant 0 : index
      %43 = vector.load %arg5[%c0_36, %c0_37] : memref<128x128xf32, #tpu.memory_space<vmem>>, vector<128x128xf32>
      %cst_38 = arith.constant dense<0.000000e+00> : vector<128x128xf32>
      %44 = tpu.matmul %39, %43, %cst_38 {dimension_numbers = #tpu.dot_dimension_numbers<[1], [0], [0], [1], [0, 0, 1, 1], [], []>} : vector<128x128xf32>, vector<128x128xf32>, vector<128x128xf32> -> vector<128x128xf32>
      %c0_39 = arith.constant 0 : index
      %c0_40 = arith.constant 0 : index
      %45 = vector.load %arg11[%c0_39, %c0_40] : memref<128x128xf32, #tpu.memory_space<vmem>>, vector<128x128xf32>
      tpu.vector_store %arg11[%c0_39, %c0_40], %44 {strides = array<i32>} : memref<128x128xf32, #tpu.memory_space<vmem>>, vector<128x128xf32>,
      %c0_41 = arith.constant 0 : index
      %c0_42 = arith.constant 0 : index
      %46 = vector.load %arg6[%c0_41, %c0_42] : memref<128x128xf32, #tpu.memory_space<vmem>>, vector<128x128xf32>
      %cst_43 = arith.constant dense<0.000000e+00> : vector<128x128xf32>
      %47 = tpu.matmul %39, %46, %cst_43 {dimension_numbers = #tpu.dot_dimension_numbers<[1], [0], [0], [1], [0, 0, 1, 1], [], []>} : vector<128x128xf32>, vector<128x128xf32>, vector<128x128xf32> -> vector<128x128xf32>
      %c0_44 = arith.constant 0 : index
      %c0_45 = arith.constant 0 : index
      %48 = vector.load %arg12[%c0_44, %c0_45] : memref<128x128xf32, #tpu.memory_space<vmem>>, vector<128x128xf32>
      tpu.vector_store %arg12[%c0_44, %c0_45], %47 {strides = array<i32>} : memref<128x128xf32, #tpu.memory_space<vmem>>, vector<128x128xf32>,
      %cst_46 = arith.constant 0.000000e+00 : f32
      %49 = vector.broadcast %cst_46 : f32 to vector<128x128xf32>
      %c0_47 = arith.constant 0 : index
      %c0_48 = arith.constant 0 : index
      %50 = vector.load %arg13[%c0_47, %c0_48] : memref<128x128xf32, #tpu.memory_space<vmem>>, vector<128x128xf32>
      tpu.vector_store %arg13[%c0_47, %c0_48], %49 {strides = array<i32>} : memref<128x128xf32, #tpu.memory_space<vmem>>, vector<128x128xf32>,
      %cst_49 = arith.constant 0.000000e+00 : f32
      %51 = vector.broadcast %cst_49 : f32 to vector<128x128xf32>
      %c0_50 = arith.constant 0 : index
      %c0_51 = arith.constant 0 : index
      %52 = vector.load %arg14[%c0_50, %c0_51] : memref<128x128xf32, #tpu.memory_space<vmem>>, vector<128x128xf32>
      tpu.vector_store %arg14[%c0_50, %c0_51], %51 {strides = array<i32>} : memref<128x128xf32, #tpu.memory_space<vmem>>, vector<128x128xf32>,
    } else {
    }
    %c0 = arith.constant 0 : index
    %c0_1 = arith.constant 0 : index
    %3 = vector.load %arg3[%c0, %c0_1] : memref<128x128xf32, #tpu.memory_space<vmem>>, vector<128x128xf32>
    %c0_2 = arith.constant 0 : index
    %c0_3 = arith.constant 0 : index
    %4 = vector.load %arg4[%c0_2, %c0_3] : memref<128x128xf32, #tpu.memory_space<vmem>>, vector<128x128xf32>
    %cst = arith.constant dense<0.000000e+00> : vector<128x128xf32>
    %5 = tpu.matmul %3, %4, %cst {dimension_numbers = #tpu.dot_dimension_numbers<[1], [0], [0], [1], [0, 0, 1, 1], [], []>} : vector<128x128xf32>, vector<128x128xf32>, vector<128x128xf32> -> vector<128x128xf32>
    %c0_4 = arith.constant 0 : index
    %c0_5 = arith.constant 0 : index
    %6 = vector.load %arg5[%c0_4, %c0_5] : memref<128x128xf32, #tpu.memory_space<vmem>>, vector<128x128xf32>
    %cst_6 = arith.constant dense<0.000000e+00> : vector<128x128xf32>
    %7 = tpu.matmul %3, %6, %cst_6 {dimension_numbers = #tpu.dot_dimension_numbers<[1], [0], [0], [1], [0, 0, 1, 1], [], []>} : vector<128x128xf32>, vector<128x128xf32>, vector<128x128xf32> -> vector<128x128xf32>
    %c0_7 = arith.constant 0 : index
    %c0_8 = arith.constant 0 : index
    %8 = vector.load %arg10[%c0_7, %c0_8] : memref<128x128xf32, #tpu.memory_space<vmem>>, vector<128x128xf32>
    %c0_9 = arith.constant 0 : index
    %c0_10 = arith.constant 0 : index
    %9 = vector.load %arg11[%c0_9, %c0_10] : memref<128x128xf32, #tpu.memory_space<vmem>>, vector<128x128xf32>
    %cst_11 = arith.constant dense<0.000000e+00> : vector<128x128xf32>
    %10 = tpu.matmul %8, %7, %cst_11 {dimension_numbers = #tpu.dot_dimension_numbers<[1], [1], [0], [0], [0, 0, 1, 0], [], []>} : vector<128x128xf32>, vector<128x128xf32>, vector<128x128xf32> -> vector<128x128xf32>
    %cst_12 = arith.constant dense<0.000000e+00> : vector<128x128xf32>
    %11 = tpu.matmul %9, %5, %cst_12 {dimension_numbers = #tpu.dot_dimension_numbers<[1], [1], [0], [0], [0, 0, 1, 0], [], []>} : vector<128x128xf32>, vector<128x128xf32>, vector<128x128xf32> -> vector<128x128xf32>
    %c0_13 = arith.constant 0 : index
    %c0_14 = arith.constant 0 : index
    %12 = vector.load %arg7[%c0_13, %c0_14] : memref<128x128xbf16, #tpu.memory_space<vmem>>, vector<128x128xbf16>
    %13 = arith.extf %12 : vector<128x128xbf16> to vector<128x128xf32>
    %cst_15 = arith.constant 0.000000e+00 : f32
    %14 = vector.broadcast %cst_15 : f32 to vector<128x128xf32>
    %15 = arith.subf %14, %10 : vector<128x128xf32>
    %16 = arith.negf %15 : vector<128x128xf32>
    %17 = math.exp %16 : vector<128x128xf32>
    %cst_16 = arith.constant 1.000000e+00 : f32
    %18 = vector.broadcast %cst_16 : f32 to vector<128x128xf32>
    %19 = arith.addf %18, %17 : vector<128x128xf32>
    %20 = arith.divf %18, %19 : vector<128x128xf32>
    %21 = arith.mulf %20, %13 : vector<128x128xf32>
    %22 = arith.negf %11 : vector<128x128xf32>
    %23 = math.exp %22 : vector<128x128xf32>
    %cst_17 = arith.constant 1.000000e+00 : f32
    %24 = vector.broadcast %cst_17 : f32 to vector<128x128xf32>
    %25 = arith.addf %24, %23 : vector<128x128xf32>
    %26 = arith.divf %24, %25 : vector<128x128xf32>
    %27 = arith.mulf %26, %13 : vector<128x128xf32>
    %c0_18 = arith.constant 0 : index
    %c0_19 = arith.constant 0 : index
    %28 = vector.load %arg13[%c0_18, %c0_19] : memref<128x128xf32, #tpu.memory_space<vmem>>, vector<128x128xf32>
    %cst_20 = arith.constant dense<0.000000e+00> : vector<128x128xf32>
    %29 = tpu.matmul %21, %5, %cst_20 {dimension_numbers = #tpu.dot_dimension_numbers<[1], [0], [0], [1], [0, 0, 1, 1], [], []>} : vector<128x128xf32>, vector<128x128xf32>, vector<128x128xf32> -> vector<128x128xf32>
    %30 = arith.addf %28, %29 : vector<128x128xf32>
    %c0_21 = arith.constant 0 : index
    %c0_22 = arith.constant 0 : index
    %31 = vector.load %arg13[%c0_21, %c0_22] : memref<128x128xf32, #tpu.memory_space<vmem>>, vector<128x128xf32>
    tpu.vector_store %arg13[%c0_21, %c0_22], %30 {strides = array<i32>} : memref<128x128xf32, #tpu.memory_space<vmem>>, vector<128x128xf32>,
    %c0_23 = arith.constant 0 : index
    %c0_24 = arith.constant 0 : index
    %32 = vector.load %arg14[%c0_23, %c0_24] : memref<128x128xf32, #tpu.memory_space<vmem>>, vector<128x128xf32>
    %cst_25 = arith.constant dense<0.000000e+00> : vector<128x128xf32>
    %33 = tpu.matmul %27, %7, %cst_25 {dimension_numbers = #tpu.dot_dimension_numbers<[1], [0], [0], [1], [0, 0, 1, 1], [], []>} : vector<128x128xf32>, vector<128x128xf32>, vector<128x128xf32> -> vector<128x128xf32>
    %34 = arith.addf %32, %33 : vector<128x128xf32>
    %c0_26 = arith.constant 0 : index
    %c0_27 = arith.constant 0 : index
    %35 = vector.load %arg14[%c0_26, %c0_27] : memref<128x128xf32, #tpu.memory_space<vmem>>, vector<128x128xf32>
    tpu.vector_store %arg14[%c0_26, %c0_27], %34 {strides = array<i32>} : memref<128x128xf32, #tpu.memory_space<vmem>>, vector<128x128xf32>,
    %c1_i32 = arith.constant 1 : i32
    %36 = arith.cmpi eq, %arg1, %c1_i32 : i32
    %37 = arith.extui %36 : i1 to i32
    %c0_i32_28 = arith.constant 0 : i32
    %38 = arith.cmpi ne, %37, %c0_i32_28 : i32
    scf.if %38 {
      %c0_29 = arith.constant 0 : index
      %c0_30 = arith.constant 0 : index
      %39 = vector.load %arg12[%c0_29, %c0_30] : memref<128x128xf32, #tpu.memory_space<vmem>>, vector<128x128xf32>
      %c0_31 = arith.constant 0 : index
      %c0_32 = arith.constant 0 : index
      %40 = vector.load %arg14[%c0_31, %c0_32] : memref<128x128xf32, #tpu.memory_space<vmem>>, vector<128x128xf32>
      %41 = arith.addf %39, %40 : vector<128x128xf32>
      %c0_33 = arith.constant 0 : index
      %c0_34 = arith.constant 0 : index
      %42 = vector.load %arg13[%c0_33, %c0_34] : memref<128x128xf32, #tpu.memory_space<vmem>>, vector<128x128xf32>
      %c0_35 = arith.constant 0 : index
      %c0_36 = arith.constant 0 : index
      %43 = vector.load %arg14[%c0_35, %c0_36] : memref<128x128xf32, #tpu.memory_space<vmem>>, vector<128x128xf32>
      %44 = arith.subf %42, %43 : vector<128x128xf32>
      %c0_37 = arith.constant 0 : index
      %c0_38 = arith.constant 0 : index
      %45 = vector.load %arg8[%c0_37, %c0_38] : memref<128x128xf32, #tpu.memory_space<vmem>>, vector<128x128xf32>
      tpu.vector_store %arg8[%c0_37, %c0_38], %44 {strides = array<i32>} : memref<128x128xf32, #tpu.memory_space<vmem>>, vector<128x128xf32>,
      %c0_39 = arith.constant 0 : index
      %c0_40 = arith.constant 0 : index
      %46 = vector.load %arg9[%c0_39, %c0_40] : memref<128x128xf32, #tpu.memory_space<vmem>>, vector<128x128xf32>
      tpu.vector_store %arg9[%c0_39, %c0_40], %41 {strides = array<i32>} : memref<128x128xf32, #tpu.memory_space<vmem>>, vector<128x128xf32>,
    } else {
    }
    return
  }
  func.func @transform_0(%arg0: i32, %arg1: i32) -> (i32, i32) {
    %c0_i32 = arith.constant 0 : i32
    %c0_i32_0 = arith.constant 0 : i32
    return %arg0, %c0_i32 : i32, i32
  }
  func.func @transform_1(%arg0: i32, %arg1: i32) -> (i32, i32) {
    %c0_i32 = arith.constant 0 : i32
    %c0_i32_0 = arith.constant 0 : i32
    return %arg1, %c0_i32 : i32, i32
  }
  func.func @transform_2(%arg0: i32, %arg1: i32) -> (i32, i32) {
    %c0_i32 = arith.constant 0 : i32
    %c0_i32_0 = arith.constant 0 : i32
    %c0_i32_1 = arith.constant 0 : i32
    return %c0_i32, %c0_i32_0 : i32, i32
  }
  func.func @transform_3(%arg0: i32, %arg1: i32) -> (i32, i32) {
    %c0_i32 = arith.constant 0 : i32
    %c0_i32_0 = arith.constant 0 : i32
    %c0_i32_1 = arith.constant 0 : i32
    return %c0_i32, %c0_i32_0 : i32, i32
  }
  func.func @transform_4(%arg0: i32, %arg1: i32) -> (i32, i32) {
    %c0_i32 = arith.constant 0 : i32
    %c0_i32_0 = arith.constant 0 : i32
    %c0_i32_1 = arith.constant 0 : i32
    return %c0_i32, %c0_i32_0 : i32, i32
  }
  func.func @transform_5(%arg0: i32, %arg1: i32) -> (i32, i32) {
    %c0_i32 = arith.constant 0 : i32
    return %arg0, %arg1 : i32, i32
  }
  func.func @transform_6(%arg0: i32, %arg1: i32) -> (i32, i32) {
    %c0_i32 = arith.constant 0 : i32
    %c0_i32_0 = arith.constant 0 : i32
    return %arg0, %c0_i32 : i32, i32
  }
  func.func @transform_7(%arg0: i32, %arg1: i32) -> (i32, i32) {
    %c0_i32 = arith.constant 0 : i32
    %c0_i32_0 = arith.constant 0 : i32
    return %arg0, %c0_i32 : i32, i32
  }
}

</mosaic_0001>

<llo_original>
// kernel: tpu_custom_call.1
$region0: #{tpu_custom_call.1}
  #allocation0 [shape = 'u32[]', space=smem, size = 0x4, offset = 0x4, fixed_abs, tag = 'smem constant byte address 0x4 - core index']
  #allocation1 [shape = 'u32[72,128]{1,0:T(1,128)}', space=vmem, size = 0x9000, scoped, tag = 'internal scratch']
  #allocation2 [shape = 'f32[128,128]{1,0:T(8,128)}', space=vmem, size = 0x10000, scoped, tag = 'scratch operand']
  #allocation3 [shape = 'f32[128,128]{1,0:T(8,128)}', space=vmem, size = 0x10000, scoped, tag = 'scratch operand']
  #allocation4 [shape = 'f32[128,128]{1,0:T(8,128)}', space=vmem, size = 0x10000, scoped, tag = 'scratch operand']
  #allocation5 [shape = 'f32[128,128]{1,0:T(8,128)}', space=vmem, size = 0x10000, scoped, tag = 'scratch operand']
  #allocation6 [shape = 'f32[128,128]{1,0:T(8,128)}', space=vmem, size = 0x10000, scoped, tag = 'scratch operand']
  %s0 = inlined_call_operand.hbm [shape: f32[256,128], index: 0, kind: input, shape index: {}]
  %s1 = inlined_call_operand.hbm [shape: f32[256,128], index: 1, kind: input, shape index: {}]
  %s2 = inlined_call_operand.hbm [shape: f32[128,128], index: 2, kind: input, shape index: {}]
  %s3 = inlined_call_operand.hbm [shape: f32[128,128], index: 3, kind: input, shape index: {}]
  %s4 = inlined_call_operand.hbm [shape: f32[128,128], index: 4, kind: input, shape index: {}]
  %s5 = inlined_call_operand.hbm [shape: bf16[256,256], index: 5, kind: input, shape index: {}]
  %s6 = inlined_call_operand.hbm [shape: f32[256,128], index: 6, kind: output, shape index: {0}]
  %s7 = inlined_call_operand.hbm [shape: f32[256,128], index: 7, kind: output, shape index: {1}]
  %8 = xla_tuple %s6, %s7
  %s9 = sld [smem:[#allocation0]]
  $region97: #{tpu_custom_call.1} parent=0
    _
  %s11 = ssub.s32 1, %s9
  %s12 = scalar_select 0, %s11, %s9
  $region1: #{tpu_custom_call.1} parent=0
    #allocation7 [shape = 'u8[131072]{0}', space=vmem, size = 0x20000, scoped, tag = 'input window, operand 0']
    #allocation8 [shape = 's32[2]{0}', space=sflag, size = 0x8, scoped, tag = 'scoped memory for tpu_custom_call.1']
    #allocation9 [shape = 's32[2]{0}', space=sflag, size = 0x8, scoped, tag = 'scoped memory for tpu_custom_call.1']
    #allocation10 [shape = 'u8[131072]{0}', space=vmem, size = 0x20000, scoped, tag = 'input window, operand 1']
    #allocation11 [shape = 's32[2]{0}', space=sflag, size = 0x8, scoped, tag = 'scoped memory for tpu_custom_call.1']
    #allocation12 [shape = 'u8[65536]{0}', space=vmem, size = 0x10000, scoped, tag = 'input window, operand 2, single buffered']
    #allocation13 [shape = 'u8[65536]{0}', space=vmem, size = 0x10000, scoped, tag = 'input window, operand 3, single buffered']
    #allocation14 [shape = 's32[1]{0}', space=sflag, size = 0x4, scoped, tag = 'scoped memory for tpu_custom_call.1']
    #allocation15 [shape = 'u8[65536]{0}', space=vmem, size = 0x10000, scoped, tag = 'input window, operand 4, single buffered']
    #allocation16 [shape = 'u8[65536]{0}', space=vmem, size = 0x10000, scoped, tag = 'input window, operand 5']
    #allocation17 [shape = 's32[2]{0}', space=sflag, size = 0x8, scoped, tag = 'scoped memory for tpu_custom_call.1']
    #allocation18 [shape = 'u8[131072]{0}', space=vmem, size = 0x20000, scoped, tag = 'output window, operand 0']
    #allocation19 [shape = 'u8[131072]{0}', space=vmem, size = 0x20000, scoped, tag = 'output window, operand 1']
    #allocation20 [shape = 's32[2]{0}', space=sflag, size = 0x8, scoped, tag = 'scoped memory for tpu_custom_call.1']
    %13 = vsyncpa [#allocation8], 0
    %s14 = scalar_lea.sflag [#allocation8], 1
    %15 = vsyncpa %s14, 0
    %16 = vsyncpa [#allocation11], 0
    %s17 = scalar_lea.sflag [#allocation11], 1
    %18 = vsyncpa %s17, 0
    %19 = vsyncpa [#allocation14], 0
    %20 = vsyncpa [#allocation17], 0
    %s21 = scalar_lea.sflag [#allocation17], 1
    %22 = vsyncpa %s21, 0
    %23 = vsyncpa [#allocation9], 0
    %s24 = scalar_lea.sflag [#allocation9], 1
    %25 = vsyncpa %s24, 0
    %26 = vsyncpa [#allocation20], 0
    %s27 = scalar_lea.sflag [#allocation20], 1
    %28 = vsyncpa %s27, 0
    loop: start=0, step=1, limit=6
    $region2: #{tpu_custom_call.1} parent=1 // loop_pre_header
      _
    $region3: #{tpu_custom_call.1} parent=1 // loop_header
      %s30 = sphi 0, %s34
      %p31 = scmp.ge.s32.totalorder %s30, 6
      %s37 = sphi 0, %s49
      %s38 = sphi 0, %s45
      %s39 = sphi 0, %s37
      %s40 = sphi 0, %s38
      %s41 = sphi 0, %s39
      %s42 = sphi 0, %s40
      %s52 = sphi 0, %s54
      %s55 = sphi 0, %s52
      %s56 = sphi 0, %s55
      %s72 = sphi 0, %s56
      %s78 = sphi 0, %s80
      %s81 = sphi 0, %s78
      %s82 = sphi 0, %s81
      %s98 = sphi 0, %s82
      %s102 = sphi 0, %s102
      %s104 = sphi 0, %s102
      %s105 = sphi 0, %s104
      %s119 = sphi 0, %s105
      %s123 = sphi 0, %s123
      %s125 = sphi 0, %s123
      %s126 = sphi 0, %s125
      %s140 = sphi 0, %s126
      %s144 = sphi 0, %s144
      %s146 = sphi 0, %s144
      %s147 = sphi 0, %s146
      %s161 = sphi 0, %s147
      %s169 = sphi 0, %s171
      %s172 = sphi 0, %s169
      %s173 = sphi 0, %s172
      %s189 = sphi 0, %s173
      %s195 = sphi 0, %s197
      %s198 = sphi 0, %s195
      %s199 = sphi 0, %s198
      %s215 = sphi 0, %s199
      %s221 = sphi 0, %s223
      %s224 = sphi 0, %s221
      %s225 = sphi 0, %s224
      %s241 = sphi 0, %s225
    $region4: #{tpu_custom_call.1} parent=1 // loop_header_branch
      %33 = sbr.rel (%p31) target = $region8
    $region5: #{tpu_custom_call.1} parent=1 // loop_body
      %s35 = ssub.s32 %s30, 1
      %s36 = ssub.s32 %s30, 2
      %s43 = sadd.s32 1, %s38
      %p44 = scmp.ge.s32.totalorder %s43, 2
      %s45 = scalar_select %p44, 0, %s43
      %s46 = sadd.s32 1, %s37
      %s47 = scalar_select %p44, %s46, %s37
      %p48 = scmp.ge.s32.totalorder %s47, 2
      %s49 = scalar_select %p48, 0, %s47
      %s50 = ssub.s32 %s37, %s49
      %p51 = scmp.eq.s32.totalorder %s50, 0
      %s53 = sadd.s32 %s52, 1
      %s54 = scalar_select %p51, %s52, %s53
      %p57 = pneg %p51
      %p58 = scmp.eq.s32.totalorder %s30, 3
      %p59 = por %p57, %p58
      %p60 = scmp.ne.s32.totalorder %s52, %s55
      %p61 = scmp.eq.s32.totalorder %s30, 0
      %p62 = por %p60, %p61
      %p63 = scmp.ne.s32.totalorder %s52, %s55
      %p64 = scmp.eq.s32.totalorder %s35, 3
      %p65 = por %p63, %p64
      %p66 = scmp.ne.s32.totalorder %s55, %s56
      %p67 = scmp.eq.s32.totalorder %s35, 0
      %p68 = por %p66, %p67
      %p69 = scmp.ne.s32.totalorder %s55, %s56
      %p70 = scmp.eq.s32.totalorder %s36, 3
      %p71 = por %p69, %p70
      %p73 = scmp.ne.s32.totalorder %s56, %s72
      %p74 = scmp.eq.s32.totalorder %s36, 0
      %p75 = por %p73, %p74
      %s76 = ssub.s32 %s38, %s45
      %p77 = scmp.eq.s32.totalorder %s76, 0
      %s79 = sadd.s32 %s78, 1
      %s80 = scalar_select %p77, %s78, %s79
      %p83 = pneg %p77
      %p84 = scmp.eq.s32.totalorder %s30, 3
      %p85 = por %p83, %p84
      %p86 = scmp.ne.s32.totalorder %s78, %s81
      %p87 = scmp.eq.s32.totalorder %s30, 0
      %p88 = por %p86, %p87
      %p89 = scmp.ne.s32.totalorder %s78, %s81
      %p90 = scmp.eq.s32.totalorder %s35, 3
      %p91 = por %p89, %p90
      %p92 = scmp.ne.s32.totalorder %s81, %s82
      %p93 = scmp.eq.s32.totalorder %s35, 0
      %p94 = por %p92, %p93
      %p95 = scmp.ne.s32.totalorder %s81, %s82
      %p96 = scmp.eq.s32.totalorder %s36, 3
      %p97 = por %p95, %p96
      %p99 = scmp.ne.s32.totalorder %s82, %s98
      %p100 = scmp.eq.s32.totalorder %s36, 0
      %p101 = por %p99, %p100
      %s103 = sadd.s32 %s102, 1
      %p106 = scmp.eq.s32.totalorder %s30, 3
      %p107 = scmp.ne.s32.totalorder %s102, %s104
      %p108 = scmp.eq.s32.totalorder %s30, 0
      %p109 = por %p107, %p108
      %p110 = scmp.ne.s32.totalorder %s102, %s104
      %p111 = scmp.eq.s32.totalorder %s35, 3
      %p112 = por %p110, %p111
      %p113 = scmp.ne.s32.totalorder %s104, %s105
      %p114 = scmp.eq.s32.totalorder %s35, 0
      %p115 = por %p113, %p114
      %p116 = scmp.ne.s32.totalorder %s104, %s105
      %p117 = scmp.eq.s32.totalorder %s36, 3
      %p118 = por %p116, %p117
      %p120 = scmp.ne.s32.totalorder %s105, %s119
      %p121 = scmp.eq.s32.totalorder %s36, 0
      %p122 = por %p120, %p121
      %s124 = sadd.s32 %s123, 1
      %p127 = scmp.eq.s32.totalorder %s30, 3
      %p128 = scmp.ne.s32.totalorder %s123, %s125
      %p129 = scmp.eq.s32.totalorder %s30, 0
      %p130 = por %p128, %p129
      %p131 = scmp.ne.s32.totalorder %s123, %s125
      %p132 = scmp.eq.s32.totalorder %s35, 3
      %p133 = por %p131, %p132
      %p134 = scmp.ne.s32.totalorder %s125, %s126
      %p135 = scmp.eq.s32.totalorder %s35, 0
      %p136 = por %p134, %p135
      %p137 = scmp.ne.s32.totalorder %s125, %s126
      %p138 = scmp.eq.s32.totalorder %s36, 3
      %p139 = por %p137, %p138
      %p141 = scmp.ne.s32.totalorder %s126, %s140
      %p142 = scmp.eq.s32.totalorder %s36, 0
      %p143 = por %p141, %p142
      %s145 = sadd.s32 %s144, 1
      %p148 = scmp.eq.s32.totalorder %s30, 3
      %p149 = scmp.ne.s32.totalorder %s144, %s146
      %p150 = scmp.eq.s32.totalorder %s30, 0
      %p151 = por %p149, %p150
      %p152 = scmp.ne.s32.totalorder %s144, %s146
      %p153 = scmp.eq.s32.totalorder %s35, 3
      %p154 = por %p152, %p153
      %p155 = scmp.ne.s32.totalorder %s146, %s147
      %p156 = scmp.eq.s32.totalorder %s35, 0
      %p157 = por %p155, %p156
      %p158 = scmp.ne.s32.totalorder %s146, %s147
      %p159 = scmp.eq.s32.totalorder %s36, 3
      %p160 = por %p158, %p159
      %p162 = scmp.ne.s32.totalorder %s147, %s161
      %p163 = scmp.eq.s32.totalorder %s36, 0
      %p164 = por %p162, %p163
      %s165 = ssub.s32 %s37, %s49
      %s166 = ssub.s32 %s38, %s45
      %s167 = sor.u32 %s165, %s166
      %p168 = scmp.eq.s32.totalorder %s167, 0
      %s170 = sadd.s32 %s169, 1
      %s171 = scalar_select %p168, %s169, %s170
      %p174 = pneg %p168
      %p175 = scmp.eq.s32.totalorder %s30, 3
      %p176 = por %p174, %p175
      %p177 = scmp.ne.s32.totalorder %s169, %s172
      %p178 = scmp.eq.s32.totalorder %s30, 0
      %p179 = por %p177, %p178
      %p180 = scmp.ne.s32.totalorder %s169, %s172
      %p181 = scmp.eq.s32.totalorder %s35, 3
      %p182 = por %p180, %p181
      %p183 = scmp.ne.s32.totalorder %s172, %s173
      %p184 = scmp.eq.s32.totalorder %s35, 0
      %p185 = por %p183, %p184
      %p186 = scmp.ne.s32.totalorder %s172, %s173
      %p187 = scmp.eq.s32.totalorder %s36, 3
      %p188 = por %p186, %p187
      %p190 = scmp.ne.s32.totalorder %s173, %s189
      %p191 = scmp.eq.s32.totalorder %s36, 0
      %p192 = por %p190, %p191
      %s193 = ssub.s32 %s37, %s49
      %p194 = scmp.eq.s32.totalorder %s193, 0
      %s196 = sadd.s32 %s195, 1
      %s197 = scalar_select %p194, %s195, %s196
      %p200 = pneg %p194
      %p201 = scmp.eq.s32.totalorder %s30, 3
      %p202 = por %p200, %p201
      %p203 = scmp.ne.s32.totalorder %s195, %s198
      %p204 = scmp.eq.s32.totalorder %s30, 0
      %p205 = por %p203, %p204
      %p206 = scmp.ne.s32.totalorder %s195, %s198
      %p207 = scmp.eq.s32.totalorder %s35, 3
      %p208 = por %p206, %p207
      %p209 = scmp.ne.s32.totalorder %s198, %s199
      %p210 = scmp.eq.s32.totalorder %s35, 0
      %p211 = por %p209, %p210
      %p212 = scmp.ne.s32.totalorder %s198, %s199
      %p213 = scmp.eq.s32.totalorder %s36, 3
      %p214 = por %p212, %p213
      %p216 = scmp.ne.s32.totalorder %s199, %s215
      %p217 = scmp.eq.s32.totalorder %s36, 0
      %p218 = por %p216, %p217
      %s219 = ssub.s32 %s37, %s49
      %p220 = scmp.eq.s32.totalorder %s219, 0
      %s222 = sadd.s32 %s221, 1
      %s223 = scalar_select %p220, %s221, %s222
      %p226 = pneg %p220
      %p227 = scmp.eq.s32.totalorder %s30, 3
      %p228 = por %p226, %p227
      %p229 = scmp.ne.s32.totalorder %s221, %s224
      %p230 = scmp.eq.s32.totalorder %s30, 0
      %p231 = por %p229, %p230
      %p232 = scmp.ne.s32.totalorder %s221, %s224
      %p233 = scmp.eq.s32.totalorder %s35, 3
      %p234 = por %p232, %p233
      %p235 = scmp.ne.s32.totalorder %s224, %s225
      %p236 = scmp.eq.s32.totalorder %s35, 0
      %p237 = por %p235, %p236
      %p238 = scmp.ne.s32.totalorder %s224, %s225
      %p239 = scmp.eq.s32.totalorder %s36, 3
      %p240 = por %p238, %p239
      %p242 = scmp.ne.s32.totalorder %s225, %s241
      %p243 = scmp.eq.s32.totalorder %s36, 0
      %p244 = por %p242, %p243
      %p245 = scmp.le.s32.totalorder 1, %s30
      %p246 = scmp.lt.s32.totalorder %s30, 5
      %p247 = pnand %p245, %p246
      %p248 = pneg %p247
      // Predicated region
      $region9: #{tpu_custom_call.1} parent=5 // pred_check
        _
      $region10: #{tpu_custom_call.1} parent=5 // pred_check_branch
        %250 = sbr.rel (%p247) target = $region12
      $region11: #{tpu_custom_call.1} parent=5 // pred_region
        %s251 = ssub.s32 %s30, 1
        // Predicated region
        $region13: #{tpu_custom_call.1} parent=11 // pred_check
          %p252 = pneg %p115
        $region14: #{tpu_custom_call.1} parent=11 // pred_check_branch
          %254 = sbr.rel (%p252) target = $region16
        $region15: #{tpu_custom_call.1} parent=11 // pred_region
          %256 = vsyncadd [#allocation11], 0
          %s257 = sshll.u32 %s2, 4
          %s258 = int_to_ptr.hbm [resolvable:$true] %s257
          %s259 = sshll.u32 [#allocation12], 4
          %s260 = int_to_ptr.vmem [resolvable:$true] %s259
          %265 = dma.hbm_to_vmem [thread:$0]  %s258, 2048, %s260, [#allocation11], 128, 128, 8
        $region16: #{tpu_custom_call.1} parent=11 // pred_fallthru
          _
        // Predicated region
        $region17: #{tpu_custom_call.1} parent=11 // pred_check
          %p266 = pneg %p136
        $region18: #{tpu_custom_call.1} parent=11 // pred_check_branch
          %268 = sbr.rel (%p266) target = $region20
        $region19: #{tpu_custom_call.1} parent=11 // pred_region
          %270 = vsyncadd [#allocation14], 0
          %s271 = sshll.u32 %s3, 4
          %s272 = int_to_ptr.hbm [resolvable:$true] %s271
          %s273 = sshll.u32 [#allocation13], 4
          %s274 = int_to_ptr.vmem [resolvable:$true] %s273
          %279 = dma.hbm_to_vmem [thread:$0]  %s272, 2048, %s274, [#allocation14], 128, 128, 8
        $region20: #{tpu_custom_call.1} parent=11 // pred_fallthru
          _
        // Predicated region
        $region21: #{tpu_custom_call.1} parent=11 // pred_check
          %p280 = pneg %p157
        $region22: #{tpu_custom_call.1} parent=11 // pred_check_branch
          %282 = sbr.rel (%p280) target = $region24
        $region23: #{tpu_custom_call.1} parent=11 // pred_region
          %284 = vsyncadd [#allocation14], 0
          %s285 = sshll.u32 %s4, 4
          %s286 = int_to_ptr.hbm [resolvable:$true] %s285
          %s287 = sshll.u32 [#allocation15], 4
          %s288 = int_to_ptr.vmem [resolvable:$true] %s287
          %293 = dma.hbm_to_vmem [thread:$0]  %s286, 2048, %s288, [#allocation14], 128, 128, 8
        $region24: #{tpu_custom_call.1} parent=11 // pred_fallthru
          _
      $region12: #{tpu_custom_call.1} parent=5 // pred_fallthru
        _
      %p294 = scmp.lt.s32.totalorder %s30, 4
      // Predicated region
      $region25: #{tpu_custom_call.1} parent=5 // pred_check
        %p295 = pneg %p294
      $region26: #{tpu_custom_call.1} parent=5 // pred_check_branch
        %297 = sbr.rel (%p295) target = $region28
      $region27: #{tpu_custom_call.1} parent=5 // pred_region
        // Predicated region
        $region29: #{tpu_custom_call.1} parent=27 // pred_check
          %p298 = pneg %p62
        $region30: #{tpu_custom_call.1} parent=27 // pred_check_branch
          %300 = sbr.rel (%p298) target = $region32
        $region31: #{tpu_custom_call.1} parent=27 // pred_region
          %s301 = sand.u32 %s52, 1
          %s302 = scalar_lea.sflag [#allocation8], %s301
          %s303 = sand.u32 %s52, 1
          %s304 = smul.addr %s303, 128
          %s305 = scalar_lea.vmem [#allocation7], %s304
          %s306 = smul.u32 16, %s37
          %308 = vsyncadd %s302, 0
          %s309 = smul.addr %s306, 8
          %s310 = scalar_lea.hbm %s0, %s309
          %s311 = sshll.u32 %s310, 4
          %s312 = int_to_ptr.hbm [resolvable:$true] %s311
          %s313 = sshll.u32 %s305, 4
          %s314 = int_to_ptr.vmem [resolvable:$true] %s313
          %319 = dma.hbm_to_vmem [thread:$0]  %s312, 2048, %s314, %s302, 128, 128, 8
        $region32: #{tpu_custom_call.1} parent=27 // pred_fallthru
          _
        // Predicated region
        $region33: #{tpu_custom_call.1} parent=27 // pred_check
          %p320 = pneg %p88
        $region34: #{tpu_custom_call.1} parent=27 // pred_check_branch
          %322 = sbr.rel (%p320) target = $region36
        $region35: #{tpu_custom_call.1} parent=27 // pred_region
          %s323 = sand.u32 %s30, 1
          %s324 = scalar_lea.sflag [#allocation11], %s323
          %s325 = sand.u32 %s78, 1
          %s326 = smul.addr %s325, 128
          %s327 = scalar_lea.vmem [#allocation10], %s326
          %s328 = smul.u32 16, %s38
          %330 = vsyncadd %s324, 0
          %s331 = smul.addr %s328, 8
          %s332 = scalar_lea.hbm %s1, %s331
          %s333 = sshll.u32 %s332, 4
          %s334 = int_to_ptr.hbm [resolvable:$true] %s333
          %s335 = sshll.u32 %s327, 4
          %s336 = int_to_ptr.vmem [resolvable:$true] %s335
          %341 = dma.hbm_to_vmem [thread:$0]  %s334, 2048, %s336, %s324, 128, 128, 8
        $region36: #{tpu_custom_call.1} parent=27 // pred_fallthru
          _
        // Predicated region
        $region37: #{tpu_custom_call.1} parent=27 // pred_check
          %p342 = pneg %p179
        $region38: #{tpu_custom_call.1} parent=27 // pred_check_branch
          %344 = sbr.rel (%p342) target = $region40
        $region39: #{tpu_custom_call.1} parent=27 // pred_region
          %s345 = sand.u32 %s169, 1
          %s346 = scalar_lea.sflag [#allocation17], %s345
          %s347 = sand.u32 %s169, 1
          %s348 = smul.addr %s347, 64
          %s349 = scalar_lea.vmem [#allocation16], %s348
          %s350 = smul.u32 16, %s37
          %352 = vsyncadd %s346, 0
          %s353 = smul.addr %s350, 2
          %s354 = sadd.s32 %s38, %s353
          %s355 = smul.addr %s354, 4
          %s356 = scalar_lea.hbm %s5, %s355
          %s357 = sshll.u32 %s356, 4
          %s358 = int_to_ptr.hbm [resolvable:$true] %s357
          %s359 = sshll.u32 %s349, 4
          %s360 = int_to_ptr.vmem [resolvable:$true] %s359
          %365 = dma.hbm_to_vmem [thread:$0]  %s358, 1024, %s360, %s346, 128, 64, 4
        $region40: #{tpu_custom_call.1} parent=27 // pred_fallthru
          _
      $region28: #{tpu_custom_call.1} parent=5 // pred_fallthru
        _
      %p366 = scmp.le.s32.totalorder 1, %s30
      %p367 = scmp.lt.s32.totalorder %s30, 5
      %p368 = pnand %p366, %p367
      %p369 = pneg %p368
      // Predicated region
      $region41: #{tpu_custom_call.1} parent=5 // pred_check
        _
      $region42: #{tpu_custom_call.1} parent=5 // pred_check_branch
        %371 = sbr.rel (%p368) target = $region44
      $region43: #{tpu_custom_call.1} parent=5 // pred_region
        %s372 = ssub.s32 %s30, 1
        %s373 = sand.u32 %s55, 1
        %s374 = scalar_lea.sflag [#allocation8], %s373
        %s375 = sand.u32 %s55, 1
        %s376 = smul.addr %s375, 128
        %s377 = scalar_lea.vmem [#allocation7], %s376
        // Predicated region
        $region45: #{tpu_custom_call.1} parent=43 // pred_check
          %p378 = pneg %p68
        $region46: #{tpu_custom_call.1} parent=43 // pred_check_branch
          %380 = sbr.rel (%p378) target = $region48
        $region47: #{tpu_custom_call.1} parent=43 // pred_region
          %382 = dma.done %s374, 2048
        $region48: #{tpu_custom_call.1} parent=43 // pred_fallthru
          _
        %s383 = sand.u32 %s35, 1
        %s384 = scalar_lea.sflag [#allocation11], %s383
        %s385 = sand.u32 %s81, 1
        %s386 = smul.addr %s385, 128
        %s387 = scalar_lea.vmem [#allocation10], %s386
        // Predicated region
        $region49: #{tpu_custom_call.1} parent=43 // pred_check
          %p388 = pneg %p94
        $region50: #{tpu_custom_call.1} parent=43 // pred_check_branch
          %390 = sbr.rel (%p388) target = $region52
        $region51: #{tpu_custom_call.1} parent=43 // pred_region
          %392 = dma.done %s384, 2048
        $region52: #{tpu_custom_call.1} parent=43 // pred_fallthru
          _
        // Predicated region
        $region53: #{tpu_custom_call.1} parent=43 // pred_check
          %p393 = pneg %p115
        $region54: #{tpu_custom_call.1} parent=43 // pred_check_branch
          %395 = sbr.rel (%p393) target = $region56
        $region55: #{tpu_custom_call.1} parent=43 // pred_region
          %397 = dma.done [#allocation11], 2048
        $region56: #{tpu_custom_call.1} parent=43 // pred_fallthru
          _
        // Predicated region
        $region57: #{tpu_custom_call.1} parent=43 // pred_check
          %p398 = pneg %p136
        $region58: #{tpu_custom_call.1} parent=43 // pred_check_branch
          %400 = sbr.rel (%p398) target = $region60
        $region59: #{tpu_custom_call.1} parent=43 // pred_region
          %402 = dma.done [#allocation14], 2048
        $region60: #{tpu_custom_call.1} parent=43 // pred_fallthru
          _
        // Predicated region
        $region61: #{tpu_custom_call.1} parent=43 // pred_check
          %p403 = pneg %p157
        $region62: #{tpu_custom_call.1} parent=43 // pred_check_branch
          %405 = sbr.rel (%p403) target = $region64
        $region63: #{tpu_custom_call.1} parent=43 // pred_region
          %407 = dma.done [#allocation14], 2048
        $region64: #{tpu_custom_call.1} parent=43 // pred_fallthru
          _
        %s408 = sand.u32 %s172, 1
        %s409 = scalar_lea.sflag [#allocation17], %s408
        %s410 = sand.u32 %s172, 1
        %s411 = smul.addr %s410, 64
        %s412 = scalar_lea.vmem [#allocation16], %s411
        // Predicated region
        $region65: #{tpu_custom_call.1} parent=43 // pred_check
          %p413 = pneg %p185
        $region66: #{tpu_custom_call.1} parent=43 // pred_check_branch
          %415 = sbr.rel (%p413) target = $region68
        $region67: #{tpu_custom_call.1} parent=43 // pred_region
          %417 = dma.done %s409, 1024
        $region68: #{tpu_custom_call.1} parent=43 // pred_fallthru
          _
        %s418 = sand.u32 %s55, 1
        %s419 = scalar_lea.sflag [#allocation8], %s418
        %s420 = sand.u32 %s55, 1
        %s421 = smul.addr %s420, 128
        %s422 = scalar_lea.vmem [#allocation7], %s421
        %p423 = pneg %p68
        %p424 = pneg %p65
        %s425 = sand.u32 %s35, 1
        %s426 = scalar_lea.sflag [#allocation11], %s425
        %s427 = sand.u32 %s81, 1
        %s428 = smul.addr %s427, 128
        %s429 = scalar_lea.vmem [#allocation10], %s428
        %p430 = pneg %p94
        %p431 = pneg %p91
        %p432 = pneg %p115
        %p433 = pneg %p112
        %p434 = pneg %p136
        %p435 = pneg %p133
        %p436 = pneg %p157
        %p437 = pneg %p154
        %s438 = sand.u32 %s172, 1
        %s439 = scalar_lea.sflag [#allocation17], %s438
        %s440 = sand.u32 %s172, 1
        %s441 = smul.addr %s440, 64
        %s442 = scalar_lea.vmem [#allocation16], %s441
        %p443 = pneg %p185
        %p444 = pneg %p182
        %p445 = pneg %p211
        %p446 = pneg %p208
        %s447 = sand.u32 %s198, 1
        %s448 = scalar_lea.sflag [#allocation9], %s447
        %s449 = sand.u32 %s198, 1
        %s450 = smul.addr %s449, 128
        %s451 = scalar_lea.vmem [#allocation18], %s450
        %p452 = pneg %p237
        %p453 = pneg %p234
        %s454 = sand.u32 %s224, 1
        %s455 = scalar_lea.sflag [#allocation20], %s454
        %s456 = sand.u32 %s224, 1
        %s457 = smul.addr %s456, 128
        %s458 = scalar_lea.vmem [#allocation19], %s457
        %s459 = smul.u32 16, %s39
        %s460 = smul.u32 16, %s40
        %s461 = smul.u32 16, %s39
        %s462 = smul.u32 16, %s39
        %s463 = smul.u32 16, %s39
        %p464 = scmp.eq.s32.totalorder %s40, 0
        // Predicated region
        $region69: #{tpu_custom_call.1} parent=43 // pred_check
          %p465 = pneg %p464
        $region70: #{tpu_custom_call.1} parent=43 // pred_check_branch
          %467 = sbr.rel (%p465) target = $region72
        $region71: #{tpu_custom_call.1} parent=43 // pred_region
          %v468 = vld [vmem:[%s377] sm:$0xff]
          %v469 = vld [vmem:[%s377 + $0x8] sm:$0xff]
          %v470 = vld [vmem:[%s377 + $0x10] sm:$0xff]
          %v471 = vld [vmem:[%s377 + $0x18] sm:$0xff]
          %v472 = vld [vmem:[%s377 + $0x20] sm:$0xff]
          %v473 = vld [vmem:[%s377 + $0x28] sm:$0xff]
          %v474 = vld [vmem:[%s377 + $0x30] sm:$0xff]
          %v475 = vld [vmem:[%s377 + $0x38] sm:$0xff]
          %v476 = vld [vmem:[%s377 + $0x40] sm:$0xff]
          %v477 = vld [vmem:[%s377 + $0x48] sm:$0xff]
          %v478 = vld [vmem:[%s377 + $0x50] sm:$0xff]
          %v479 = vld [vmem:[%s377 + $0x58] sm:$0xff]
          %v480 = vld [vmem:[%s377 + $0x60] sm:$0xff]
          %v481 = vld [vmem:[%s377 + $0x68] sm:$0xff]
          %v482 = vld [vmem:[%s377 + $0x70] sm:$0xff]
          %v483 = vld [vmem:[%s377 + $0x78] sm:$0xff]
          %v484 = vld [vmem:[#allocation12] sm:$0xff]
          %v485 = vld [vmem:[#allocation12 + $0x8] sm:$0xff]
          %v486 = vld [vmem:[#allocation12 + $0x10] sm:$0xff]
          %v487 = vld [vmem:[#allocation12 + $0x18] sm:$0xff]
          %v488 = vld [vmem:[#allocation12 + $0x20] sm:$0xff]
          %v489 = vld [vmem:[#allocation12 + $0x28] sm:$0xff]
          %v490 = vld [vmem:[#allocation12 + $0x30] sm:$0xff]
          %v491 = vld [vmem:[#allocation12 + $0x38] sm:$0xff]
          %v492 = vld [vmem:[#allocation12 + $0x40] sm:$0xff]
          %v493 = vld [vmem:[#allocation12 + $0x48] sm:$0xff]
          %v494 = vld [vmem:[#allocation12 + $0x50] sm:$0xff]
          %v495 = vld [vmem:[#allocation12 + $0x58] sm:$0xff]
          %v496 = vld [vmem:[#allocation12 + $0x60] sm:$0xff]
          %v497 = vld [vmem:[#allocation12 + $0x68] sm:$0xff]
          %v498 = vld [vmem:[#allocation12 + $0x70] sm:$0xff]
          %v499 = vld [vmem:[#allocation12 + $0x78] sm:$0xff]
          %500 = vmatpush.msra.mxu0 %v499
          %501 = vmatpush.msra.mxu0 %v498
          %502 = vmatpush.msra.mxu0 %v497
          %503 = vmatpush.msra.mxu0 %v496
          %504 = vmatpush.msra.mxu0 %v495
          %505 = vmatpush.msra.mxu0 %v494
          %506 = vmatpush.msra.mxu0 %v493
          %507 = vmatpush.msra.mxu0 %v492
          %508 = vmatpush.msra.mxu0 %v491
          %509 = vmatpush.msra.mxu0 %v490
          %510 = vmatpush.msra.mxu0 %v489
          %511 = vmatpush.msra.mxu0 %v488
          %512 = vmatpush.msra.mxu0 %v487
          %513 = vmatpush.msra.mxu0 %v486
          %514 = vmatpush.msra.mxu0 %v485
          %515 = vmatpush.msra.mxu0 %v484
          %516 = vmatmul.f32.gmra.mxu0 %v468
          %v517 = vpop.f32.mrf.mxu0
          %v518 = vadd.f32 0.0, %v517
          %519 = vmatmul.f32.gmra.mxu0 %v469
          %v520 = vpop.f32.mrf.mxu0
          %v521 = vadd.f32 0.0, %v520
          %522 = vmatmul.f32.gmra.mxu0 %v470
          %v523 = vpop.f32.mrf.mxu0
          %v524 = vadd.f32 0.0, %v523
          %525 = vmatmul.f32.gmra.mxu0 %v471
          %v526 = vpop.f32.mrf.mxu0
          %v527 = vadd.f32 0.0, %v526
          %528 = vmatmul.f32.gmra.mxu0 %v472
          %v529 = vpop.f32.mrf.mxu0
          %v530 = vadd.f32 0.0, %v529
          %531 = vmatmul.f32.gmra.mxu0 %v473
          %v532 = vpop.f32.mrf.mxu0
          %v533 = vadd.f32 0.0, %v532
          %534 = vmatmul.f32.gmra.mxu0 %v474
          %v535 = vpop.f32.mrf.mxu0
          %v536 = vadd.f32 0.0, %v535
          %537 = vmatmul.f32.gmra.mxu0 %v475
          %v538 = vpop.f32.mrf.mxu0
          %v539 = vadd.f32 0.0, %v538
          %540 = vmatmul.f32.gmra.mxu0 %v476
          %v541 = vpop.f32.mrf.mxu0
          %v542 = vadd.f32 0.0, %v541
          %543 = vmatmul.f32.gmra.mxu0 %v477
          %v544 = vpop.f32.mrf.mxu0
          %v545 = vadd.f32 0.0, %v544
          %546 = vmatmul.f32.gmra.mxu0 %v478
          %v547 = vpop.f32.mrf.mxu0
          %v548 = vadd.f32 0.0, %v547
          %549 = vmatmul.f32.gmra.mxu0 %v479
          %v550 = vpop.f32.mrf.mxu0
          %v551 = vadd.f32 0.0, %v550
          %552 = vmatmul.f32.gmra.mxu0 %v480
          %v553 = vpop.f32.mrf.mxu0
          %v554 = vadd.f32 0.0, %v553
          %555 = vmatmul.f32.gmra.mxu0 %v481
          %v556 = vpop.f32.mrf.mxu0
          %v557 = vadd.f32 0.0, %v556
          %558 = vmatmul.f32.gmra.mxu0 %v482
          %v559 = vpop.f32.mrf.mxu0
          %v560 = vadd.f32 0.0, %v559
          %561 = vmatmul.f32.gmra.mxu0 %v483
          %v562 = vpop.f32.mrf.mxu0
          %v563 = vadd.f32 0.0, %v562
          %564 = vdwg.mxu0
          %565 = vst [vmem:[#allocation2] sm:$0xff] %v518
          %566 = vst [vmem:[#allocation2 + $0x8] sm:$0xff] %v521
          %567 = vst [vmem:[#allocation2 + $0x10] sm:$0xff] %v524
          %568 = vst [vmem:[#allocation2 + $0x18] sm:$0xff] %v527
          %569 = vst [vmem:[#allocation2 + $0x20] sm:$0xff] %v530
          %570 = vst [vmem:[#allocation2 + $0x28] sm:$0xff] %v533
          %571 = vst [vmem:[#allocation2 + $0x30] sm:$0xff] %v536
          %572 = vst [vmem:[#allocation2 + $0x38] sm:$0xff] %v539
          %573 = vst [vmem:[#allocation2 + $0x40] sm:$0xff] %v542
          %574 = vst [vmem:[#allocation2 + $0x48] sm:$0xff] %v545
          %575 = vst [vmem:[#allocation2 + $0x50] sm:$0xff] %v548
          %576 = vst [vmem:[#allocation2 + $0x58] sm:$0xff] %v551
          %577 = vst [vmem:[#allocation2 + $0x60] sm:$0xff] %v554
          %578 = vst [vmem:[#allocation2 + $0x68] sm:$0xff] %v557
          %579 = vst [vmem:[#allocation2 + $0x70] sm:$0xff] %v560
          %580 = vst [vmem:[#allocation2 + $0x78] sm:$0xff] %v563
          %v581 = vld [vmem:[#allocation13] sm:$0xff]
          %v582 = vld [vmem:[#allocation13 + $0x8] sm:$0xff]
          %v583 = vld [vmem:[#allocation13 + $0x10] sm:$0xff]
          %v584 = vld [vmem:[#allocation13 + $0x18] sm:$0xff]
          %v585 = vld [vmem:[#allocation13 + $0x20] sm:$0xff]
          %v586 = vld [vmem:[#allocation13 + $0x28] sm:$0xff]
          %v587 = vld [vmem:[#allocation13 + $0x30] sm:$0xff]
          %v588 = vld [vmem:[#allocation13 + $0x38] sm:$0xff]
          %v589 = vld [vmem:[#allocation13 + $0x40] sm:$0xff]
          %v590 = vld [vmem:[#allocation13 + $0x48] sm:$0xff]
          %v591 = vld [vmem:[#allocation13 + $0x50] sm:$0xff]
          %v592 = vld [vmem:[#allocation13 + $0x58] sm:$0xff]
          %v593 = vld [vmem:[#allocation13 + $0x60] sm:$0xff]
          %v594 = vld [vmem:[#allocation13 + $0x68] sm:$0xff]
          %v595 = vld [vmem:[#allocation13 + $0x70] sm:$0xff]
          %v596 = vld [vmem:[#allocation13 + $0x78] sm:$0xff]
          %597 = vmatpush.msra.mxu0 %v596
          %598 = vmatpush.msra.mxu0 %v595
          %599 = vmatpush.msra.mxu0 %v594
          %600 = vmatpush.msra.mxu0 %v593
          %601 = vmatpush.msra.mxu0 %v592
          %602 = vmatpush.msra.mxu0 %v591
          %603 = vmatpush.msra.mxu0 %v590
          %604 = vmatpush.msra.mxu0 %v589
          %605 = vmatpush.msra.mxu0 %v588
          %606 = vmatpush.msra.mxu0 %v587
          %607 = vmatpush.msra.mxu0 %v586
          %608 = vmatpush.msra.mxu0 %v585
          %609 = vmatpush.msra.mxu0 %v584
          %610 = vmatpush.msra.mxu0 %v583
          %611 = vmatpush.msra.mxu0 %v582
          %612 = vmatpush.msra.mxu0 %v581
          %613 = vmatmul.f32.gmra.mxu0 %v468
          %v614 = vpop.f32.mrf.mxu0
          %v615 = vadd.f32 0.0, %v614
          %616 = vmatmul.f32.gmra.mxu0 %v469
          %v617 = vpop.f32.mrf.mxu0
          %v618 = vadd.f32 0.0, %v617
          %619 = vmatmul.f32.gmra.mxu0 %v470
          %v620 = vpop.f32.mrf.mxu0
          %v621 = vadd.f32 0.0, %v620
          %622 = vmatmul.f32.gmra.mxu0 %v471
          %v623 = vpop.f32.mrf.mxu0
          %v624 = vadd.f32 0.0, %v623
          %625 = vmatmul.f32.gmra.mxu0 %v472
          %v626 = vpop.f32.mrf.mxu0
          %v627 = vadd.f32 0.0, %v626
          %628 = vmatmul.f32.gmra.mxu0 %v473
          %v629 = vpop.f32.mrf.mxu0
          %v630 = vadd.f32 0.0, %v629
          %631 = vmatmul.f32.gmra.mxu0 %v474
          %v632 = vpop.f32.mrf.mxu0
          %v633 = vadd.f32 0.0, %v632
          %634 = vmatmul.f32.gmra.mxu0 %v475
          %v635 = vpop.f32.mrf.mxu0
          %v636 = vadd.f32 0.0, %v635
          %637 = vmatmul.f32.gmra.mxu0 %v476
          %v638 = vpop.f32.mrf.mxu0
          %v639 = vadd.f32 0.0, %v638
          %640 = vmatmul.f32.gmra.mxu0 %v477
          %v641 = vpop.f32.mrf.mxu0
          %v642 = vadd.f32 0.0, %v641
          %643 = vmatmul.f32.gmra.mxu0 %v478
          %v644 = vpop.f32.mrf.mxu0
          %v645 = vadd.f32 0.0, %v644
          %646 = vmatmul.f32.gmra.mxu0 %v479
          %v647 = vpop.f32.mrf.mxu0
          %v648 = vadd.f32 0.0, %v647
          %649 = vmatmul.f32.gmra.mxu0 %v480
          %v650 = vpop.f32.mrf.mxu0
          %v651 = vadd.f32 0.0, %v650
          %652 = vmatmul.f32.gmra.mxu0 %v481
          %v653 = vpop.f32.mrf.mxu0
          %v654 = vadd.f32 0.0, %v653
          %655 = vmatmul.f32.gmra.mxu0 %v482
          %v656 = vpop.f32.mrf.mxu0
          %v657 = vadd.f32 0.0, %v656
          %658 = vmatmul.f32.gmra.mxu0 %v483
          %v659 = vpop.f32.mrf.mxu0
          %v660 = vadd.f32 0.0, %v659
          %661 = vdwg.mxu0
          %662 = vst [vmem:[#allocation3] sm:$0xff] %v615
          %663 = vst [vmem:[#allocation3 + $0x8] sm:$0xff] %v618
          %664 = vst [vmem:[#allocation3 + $0x10] sm:$0xff] %v621
          %665 = vst [vmem:[#allocation3 + $0x18] sm:$0xff] %v624
          %666 = vst [vmem:[#allocation3 + $0x20] sm:$0xff] %v627
          %667 = vst [vmem:[#allocation3 + $0x28] sm:$0xff] %v630
          %668 = vst [vmem:[#allocation3 + $0x30] sm:$0xff] %v633
          %669 = vst [vmem:[#allocation3 + $0x38] sm:$0xff] %v636
          %670 = vst [vmem:[#allocation3 + $0x40] sm:$0xff] %v639
          %671 = vst [vmem:[#allocation3 + $0x48] sm:$0xff] %v642
          %672 = vst [vmem:[#allocation3 + $0x50] sm:$0xff] %v645
          %673 = vst [vmem:[#allocation3 + $0x58] sm:$0xff] %v648
          %674 = vst [vmem:[#allocation3 + $0x60] sm:$0xff] %v651
          %675 = vst [vmem:[#allocation3 + $0x68] sm:$0xff] %v654
          %676 = vst [vmem:[#allocation3 + $0x70] sm:$0xff] %v657
          %677 = vst [vmem:[#allocation3 + $0x78] sm:$0xff] %v660
          %v678 = vld [vmem:[#allocation15] sm:$0xff]
          %v679 = vld [vmem:[#allocation15 + $0x8] sm:$0xff]
          %v680 = vld [vmem:[#allocation15 + $0x10] sm:$0xff]
          %v681 = vld [vmem:[#allocation15 + $0x18] sm:$0xff]
          %v682 = vld [vmem:[#allocation15 + $0x20] sm:$0xff]
          %v683 = vld [vmem:[#allocation15 + $0x28] sm:$0xff]
          %v684 = vld [vmem:[#allocation15 + $0x30] sm:$0xff]
          %v685 = vld [vmem:[#allocation15 + $0x38] sm:$0xff]
          %v686 = vld [vmem:[#allocation15 + $0x40] sm:$0xff]
          %v687 = vld [vmem:[#allocation15 + $0x48] sm:$0xff]
          %v688 = vld [vmem:[#allocation15 + $0x50] sm:$0xff]
          %v689 = vld [vmem:[#allocation15 + $0x58] sm:$0xff]
          %v690 = vld [vmem:[#allocation15 + $0x60] sm:$0xff]
          %v691 = vld [vmem:[#allocation15 + $0x68] sm:$0xff]
          %v692 = vld [vmem:[#allocation15 + $0x70] sm:$0xff]
          %v693 = vld [vmem:[#allocation15 + $0x78] sm:$0xff]
          %694 = vmatpush.msra.mxu0 %v693
          %695 = vmatpush.msra.mxu0 %v692
          %696 = vmatpush.msra.mxu0 %v691
          %697 = vmatpush.msra.mxu0 %v690
          %698 = vmatpush.msra.mxu0 %v689
          %699 = vmatpush.msra.mxu0 %v688
          %700 = vmatpush.msra.mxu0 %v687
          %701 = vmatpush.msra.mxu0 %v686
          %702 = vmatpush.msra.mxu0 %v685
          %703 = vmatpush.msra.mxu0 %v684
          %704 = vmatpush.msra.mxu0 %v683
          %705 = vmatpush.msra.mxu0 %v682
          %706 = vmatpush.msra.mxu0 %v681
          %707 = vmatpush.msra.mxu0 %v680
          %708 = vmatpush.msra.mxu0 %v679
          %709 = vmatpush.msra.mxu0 %v678
          %710 = vmatmul.f32.gmra.mxu0 %v468
          %v711 = vpop.f32.mrf.mxu0
          %v712 = vadd.f32 0.0, %v711
          %713 = vmatmul.f32.gmra.mxu0 %v469
          %v714 = vpop.f32.mrf.mxu0
          %v715 = vadd.f32 0.0, %v714
          %716 = vmatmul.f32.gmra.mxu0 %v470
          %v717 = vpop.f32.mrf.mxu0
          %v718 = vadd.f32 0.0, %v717
          %719 = vmatmul.f32.gmra.mxu0 %v471
          %v720 = vpop.f32.mrf.mxu0
          %v721 = vadd.f32 0.0, %v720
          %722 = vmatmul.f32.gmra.mxu0 %v472
          %v723 = vpop.f32.mrf.mxu0
          %v724 = vadd.f32 0.0, %v723
          %725 = vmatmul.f32.gmra.mxu0 %v473
          %v726 = vpop.f32.mrf.mxu0
          %v727 = vadd.f32 0.0, %v726
          %728 = vmatmul.f32.gmra.mxu0 %v474
          %v729 = vpop.f32.mrf.mxu0
          %v730 = vadd.f32 0.0, %v729
          %731 = vmatmul.f32.gmra.mxu0 %v475
          %v732 = vpop.f32.mrf.mxu0
          %v733 = vadd.f32 0.0, %v732
          %734 = vmatmul.f32.gmra.mxu0 %v476
          %v735 = vpop.f32.mrf.mxu0
          %v736 = vadd.f32 0.0, %v735
          %737 = vmatmul.f32.gmra.mxu0 %v477
          %v738 = vpop.f32.mrf.mxu0
          %v739 = vadd.f32 0.0, %v738
          %740 = vmatmul.f32.gmra.mxu0 %v478
          %v741 = vpop.f32.mrf.mxu0
          %v742 = vadd.f32 0.0, %v741
          %743 = vmatmul.f32.gmra.mxu0 %v479
          %v744 = vpop.f32.mrf.mxu0
          %v745 = vadd.f32 0.0, %v744
          %746 = vmatmul.f32.gmra.mxu0 %v480
          %v747 = vpop.f32.mrf.mxu0
          %v748 = vadd.f32 0.0, %v747
          %749 = vmatmul.f32.gmra.mxu0 %v481
          %v750 = vpop.f32.mrf.mxu0
          %v751 = vadd.f32 0.0, %v750
          %752 = vmatmul.f32.gmra.mxu0 %v482
          %v753 = vpop.f32.mrf.mxu0
          %v754 = vadd.f32 0.0, %v753
          %755 = vmatmul.f32.gmra.mxu0 %v483
          %v756 = vpop.f32.mrf.mxu0
          %v757 = vadd.f32 0.0, %v756
          %758 = vdwg.mxu0
          %759 = vst [vmem:[#allocation4] sm:$0xff] %v712
          %760 = vst [vmem:[#allocation4 + $0x8] sm:$0xff] %v715
          %761 = vst [vmem:[#allocation4 + $0x10] sm:$0xff] %v718
          %762 = vst [vmem:[#allocation4 + $0x18] sm:$0xff] %v721
          %763 = vst [vmem:[#allocation4 + $0x20] sm:$0xff] %v724
          %764 = vst [vmem:[#allocation4 + $0x28] sm:$0xff] %v727
          %765 = vst [vmem:[#allocation4 + $0x30] sm:$0xff] %v730
          %766 = vst [vmem:[#allocation4 + $0x38] sm:$0xff] %v733
          %767 = vst [vmem:[#allocation4 + $0x40] sm:$0xff] %v736
          %768 = vst [vmem:[#allocation4 + $0x48] sm:$0xff] %v739
          %769 = vst [vmem:[#allocation4 + $0x50] sm:$0xff] %v742
          %770 = vst [vmem:[#allocation4 + $0x58] sm:$0xff] %v745
          %771 = vst [vmem:[#allocation4 + $0x60] sm:$0xff] %v748
          %772 = vst [vmem:[#allocation4 + $0x68] sm:$0xff] %v751
          %773 = vst [vmem:[#allocation4 + $0x70] sm:$0xff] %v754
          %774 = vst [vmem:[#allocation4 + $0x78] sm:$0xff] %v757
          %775 = vst [vmem:[#allocation5] sm:$0xff] 0.0
          %776 = vst [vmem:[#allocation5 + $0x8] sm:$0xff] 0.0
          %777 = vst [vmem:[#allocation5 + $0x10] sm:$0xff] 0.0
          %778 = vst [vmem:[#allocation5 + $0x18] sm:$0xff] 0.0
          %779 = vst [vmem:[#allocation5 + $0x20] sm:$0xff] 0.0
          %780 = vst [vmem:[#allocation5 + $0x28] sm:$0xff] 0.0
          %781 = vst [vmem:[#allocation5 + $0x30] sm:$0xff] 0.0
          %782 = vst [vmem:[#allocation5 + $0x38] sm:$0xff] 0.0
          %783 = vst [vmem:[#allocation5 + $0x40] sm:$0xff] 0.0
          %784 = vst [vmem:[#allocation5 + $0x48] sm:$0xff] 0.0
          %785 = vst [vmem:[#allocation5 + $0x50] sm:$0xff] 0.0
          %786 = vst [vmem:[#allocation5 + $0x58] sm:$0xff] 0.0
          %787 = vst [vmem:[#allocation5 + $0x60] sm:$0xff] 0.0
          %788 = vst [vmem:[#allocation5 + $0x68] sm:$0xff] 0.0
          %789 = vst [vmem:[#allocation5 + $0x70] sm:$0xff] 0.0
          %790 = vst [vmem:[#allocation5 + $0x78] sm:$0xff] 0.0
          %791 = vst [vmem:[#allocation6] sm:$0xff] 0.0
          %792 = vst [vmem:[#allocation6 + $0x8] sm:$0xff] 0.0
          %793 = vst [vmem:[#allocation6 + $0x10] sm:$0xff] 0.0
          %794 = vst [vmem:[#allocation6 + $0x18] sm:$0xff] 0.0
          %795 = vst [vmem:[#allocation6 + $0x20] sm:$0xff] 0.0
          %796 = vst [vmem:[#allocation6 + $0x28] sm:$0xff] 0.0
          %797 = vst [vmem:[#allocation6 + $0x30] sm:$0xff] 0.0
          %798 = vst [vmem:[#allocation6 + $0x38] sm:$0xff] 0.0
          %799 = vst [vmem:[#allocation6 + $0x40] sm:$0xff] 0.0
          %800 = vst [vmem:[#allocation6 + $0x48] sm:$0xff] 0.0
          %801 = vst [vmem:[#allocation6 + $0x50] sm:$0xff] 0.0
          %802 = vst [vmem:[#allocation6 + $0x58] sm:$0xff] 0.0
          %803 = vst [vmem:[#allocation6 + $0x60] sm:$0xff] 0.0
          %804 = vst [vmem:[#allocation6 + $0x68] sm:$0xff] 0.0
          %805 = vst [vmem:[#allocation6 + $0x70] sm:$0xff] 0.0
          %806 = vst [vmem:[#allocation6 + $0x78] sm:$0xff] 0.0
        $region72: #{tpu_custom_call.1} parent=43 // pred_fallthru
          _
        %v807 = vld [vmem:[%s387] sm:$0xff]
        %v808 = vld [vmem:[%s387 + $0x8] sm:$0xff]
        %v809 = vld [vmem:[%s387 + $0x10] sm:$0xff]
        %v810 = vld [vmem:[%s387 + $0x18] sm:$0xff]
        %v811 = vld [vmem:[%s387 + $0x20] sm:$0xff]
        %v812 = vld [vmem:[%s387 + $0x28] sm:$0xff]
        %v813 = vld [vmem:[%s387 + $0x30] sm:$0xff]
        %v814 = vld [vmem:[%s387 + $0x38] sm:$0xff]
        %v815 = vld [vmem:[%s387 + $0x40] sm:$0xff]
        %v816 = vld [vmem:[%s387 + $0x48] sm:$0xff]
        %v817 = vld [vmem:[%s387 + $0x50] sm:$0xff]
        %v818 = vld [vmem:[%s387 + $0x58] sm:$0xff]
        %v819 = vld [vmem:[%s387 + $0x60] sm:$0xff]
        %v820 = vld [vmem:[%s387 + $0x68] sm:$0xff]
        %v821 = vld [vmem:[%s387 + $0x70] sm:$0xff]
        %v822 = vld [vmem:[%s387 + $0x78] sm:$0xff]
        %v823 = vld [vmem:[#allocation12] sm:$0xff]
        %v824 = vld [vmem:[#allocation12 + $0x8] sm:$0xff]
        %v825 = vld [vmem:[#allocation12 + $0x10] sm:$0xff]
        %v826 = vld [vmem:[#allocation12 + $0x18] sm:$0xff]
        %v827 = vld [vmem:[#allocation12 + $0x20] sm:$0xff]
        %v828 = vld [vmem:[#allocation12 + $0x28] sm:$0xff]
        %v829 = vld [vmem:[#allocation12 + $0x30] sm:$0xff]
        %v830 = vld [vmem:[#allocation12 + $0x38] sm:$0xff]
        %v831 = vld [vmem:[#allocation12 + $0x40] sm:$0xff]
        %v832 = vld [vmem:[#allocation12 + $0x48] sm:$0xff]
        %v833 = vld [vmem:[#allocation12 + $0x50] sm:$0xff]
        %v834 = vld [vmem:[#allocation12 + $0x58] sm:$0xff]
        %v835 = vld [vmem:[#allocation12 + $0x60] sm:$0xff]
        %v836 = vld [vmem:[#allocation12 + $0x68] sm:$0xff]
        %v837 = vld [vmem:[#allocation12 + $0x70] sm:$0xff]
        %v838 = vld [vmem:[#allocation12 + $0x78] sm:$0xff]
        %839 = vmatpush.msra.mxu0 %v838
        %840 = vmatpush.msra.mxu0 %v837
        %841 = vmatpush.msra.mxu0 %v836
        %842 = vmatpush.msra.mxu0 %v835
        %843 = vmatpush.msra.mxu0 %v834
        %844 = vmatpush.msra.mxu0 %v833
        %845 = vmatpush.msra.mxu0 %v832
        %846 = vmatpush.msra.mxu0 %v831
        %847 = vmatpush.msra.mxu0 %v830
        %848 = vmatpush.msra.mxu0 %v829
        %849 = vmatpush.msra.mxu0 %v828
        %850 = vmatpush.msra.mxu0 %v827
        %851 = vmatpush.msra.mxu0 %v826
        %852 = vmatpush.msra.mxu0 %v825
        %853 = vmatpush.msra.mxu0 %v824
        %854 = vmatpush.msra.mxu0 %v823
        %855 = vmatmul.f32.gmra.mxu0 %v807
        %v856 = vpop.f32.mrf.mxu0
        %v857 = vadd.f32 0.0, %v856
        %858 = vmatmul.f32.gmra.mxu0 %v808
        %v859 = vpop.f32.mrf.mxu0
        %v860 = vadd.f32 0.0, %v859
        %861 = vmatmul.f32.gmra.mxu0 %v809
        %v862 = vpop.f32.mrf.mxu0
        %v863 = vadd.f32 0.0, %v862
        %864 = vmatmul.f32.gmra.mxu0 %v810
        %v865 = vpop.f32.mrf.mxu0
        %v866 = vadd.f32 0.0, %v865
        %867 = vmatmul.f32.gmra.mxu0 %v811
        %v868 = vpop.f32.mrf.mxu0
        %v869 = vadd.f32 0.0, %v868
        %870 = vmatmul.f32.gmra.mxu0 %v812
        %v871 = vpop.f32.mrf.mxu0
        %v872 = vadd.f32 0.0, %v871
        %873 = vmatmul.f32.gmra.mxu0 %v813
        %v874 = vpop.f32.mrf.mxu0
        %v875 = vadd.f32 0.0, %v874
        %876 = vmatmul.f32.gmra.mxu0 %v814
        %v877 = vpop.f32.mrf.mxu0
        %v878 = vadd.f32 0.0, %v877
        %879 = vmatmul.f32.gmra.mxu0 %v815
        %v880 = vpop.f32.mrf.mxu0
        %v881 = vadd.f32 0.0, %v880
        %882 = vmatmul.f32.gmra.mxu0 %v816
        %v883 = vpop.f32.mrf.mxu0
        %v884 = vadd.f32 0.0, %v883
        %885 = vmatmul.f32.gmra.mxu0 %v817
        %v886 = vpop.f32.mrf.mxu0
        %v887 = vadd.f32 0.0, %v886
        %888 = vmatmul.f32.gmra.mxu0 %v818
        %v889 = vpop.f32.mrf.mxu0
        %v890 = vadd.f32 0.0, %v889
        %891 = vmatmul.f32.gmra.mxu0 %v819
        %v892 = vpop.f32.mrf.mxu0
        %v893 = vadd.f32 0.0, %v892
        %894 = vmatmul.f32.gmra.mxu0 %v820
        %v895 = vpop.f32.mrf.mxu0
        %v896 = vadd.f32 0.0, %v895
        %897 = vmatmul.f32.gmra.mxu0 %v821
        %v898 = vpop.f32.mrf.mxu0
        %v899 = vadd.f32 0.0, %v898
        %900 = vmatmul.f32.gmra.mxu0 %v822
        %v901 = vpop.f32.mrf.mxu0
        %v902 = vadd.f32 0.0, %v901
        %903 = vdwg.mxu0
        %v904 = vld [vmem:[#allocation13] sm:$0xff]
        %v905 = vld [vmem:[#allocation13 + $0x8] sm:$0xff]
        %v906 = vld [vmem:[#allocation13 + $0x10] sm:$0xff]
        %v907 = vld [vmem:[#allocation13 + $0x18] sm:$0xff]
        %v908 = vld [vmem:[#allocation13 + $0x20] sm:$0xff]
        %v909 = vld [vmem:[#allocation13 + $0x28] sm:$0xff]
        %v910 = vld [vmem:[#allocation13 + $0x30] sm:$0xff]
        %v911 = vld [vmem:[#allocation13 + $0x38] sm:$0xff]
        %v912 = vld [vmem:[#allocation13 + $0x40] sm:$0xff]
        %v913 = vld [vmem:[#allocation13 + $0x48] sm:$0xff]
        %v914 = vld [vmem:[#allocation13 + $0x50] sm:$0xff]
        %v915 = vld [vmem:[#allocation13 + $0x58] sm:$0xff]
        %v916 = vld [vmem:[#allocation13 + $0x60] sm:$0xff]
        %v917 = vld [vmem:[#allocation13 + $0x68] sm:$0xff]
        %v918 = vld [vmem:[#allocation13 + $0x70] sm:$0xff]
        %v919 = vld [vmem:[#allocation13 + $0x78] sm:$0xff]
        %920 = vmatpush.msra.mxu0 %v919
        %921 = vmatpush.msra.mxu0 %v918
        %922 = vmatpush.msra.mxu0 %v917
        %923 = vmatpush.msra.mxu0 %v916
        %924 = vmatpush.msra.mxu0 %v915
        %925 = vmatpush.msra.mxu0 %v914
        %926 = vmatpush.msra.mxu0 %v913
        %927 = vmatpush.msra.mxu0 %v912
        %928 = vmatpush.msra.mxu0 %v911
        %929 = vmatpush.msra.mxu0 %v910
        %930 = vmatpush.msra.mxu0 %v909
        %931 = vmatpush.msra.mxu0 %v908
        %932 = vmatpush.msra.mxu0 %v907
        %933 = vmatpush.msra.mxu0 %v906
        %934 = vmatpush.msra.mxu0 %v905
        %935 = vmatpush.msra.mxu0 %v904
        %936 = vmatmul.f32.gmra.mxu0 %v807
        %v937 = vpop.f32.mrf.mxu0
        %v938 = vadd.f32 0.0, %v937
        %939 = vmatmul.f32.gmra.mxu0 %v808
        %v940 = vpop.f32.mrf.mxu0
        %v941 = vadd.f32 0.0, %v940
        %942 = vmatmul.f32.gmra.mxu0 %v809
        %v943 = vpop.f32.mrf.mxu0
        %v944 = vadd.f32 0.0, %v943
        %945 = vmatmul.f32.gmra.mxu0 %v810
        %v946 = vpop.f32.mrf.mxu0
        %v947 = vadd.f32 0.0, %v946
        %948 = vmatmul.f32.gmra.mxu0 %v811
        %v949 = vpop.f32.mrf.mxu0
        %v950 = vadd.f32 0.0, %v949
        %951 = vmatmul.f32.gmra.mxu0 %v812
        %v952 = vpop.f32.mrf.mxu0
        %v953 = vadd.f32 0.0, %v952
        %954 = vmatmul.f32.gmra.mxu0 %v813
        %v955 = vpop.f32.mrf.mxu0
        %v956 = vadd.f32 0.0, %v955
        %957 = vmatmul.f32.gmra.mxu0 %v814
        %v958 = vpop.f32.mrf.mxu0
        %v959 = vadd.f32 0.0, %v958
        %960 = vmatmul.f32.gmra.mxu0 %v815
        %v961 = vpop.f32.mrf.mxu0
        %v962 = vadd.f32 0.0, %v961
        %963 = vmatmul.f32.gmra.mxu0 %v816
        %v964 = vpop.f32.mrf.mxu0
        %v965 = vadd.f32 0.0, %v964
        %966 = vmatmul.f32.gmra.mxu0 %v817
        %v967 = vpop.f32.mrf.mxu0
        %v968 = vadd.f32 0.0, %v967
        %969 = vmatmul.f32.gmra.mxu0 %v818
        %v970 = vpop.f32.mrf.mxu0
        %v971 = vadd.f32 0.0, %v970
        %972 = vmatmul.f32.gmra.mxu0 %v819
        %v973 = vpop.f32.mrf.mxu0
        %v974 = vadd.f32 0.0, %v973
        %975 = vmatmul.f32.gmra.mxu0 %v820
        %v976 = vpop.f32.mrf.mxu0
        %v977 = vadd.f32 0.0, %v976
        %978 = vmatmul.f32.gmra.mxu0 %v821
        %v979 = vpop.f32.mrf.mxu0
        %v980 = vadd.f32 0.0, %v979
        %981 = vmatmul.f32.gmra.mxu0 %v822
        %v982 = vpop.f32.mrf.mxu0
        %v983 = vadd.f32 0.0, %v982
        %984 = vdwg.mxu0
        %v985 = vld [vmem:[#allocation2] sm:$0xff]
        %v986 = vld [vmem:[#allocation2 + $0x8] sm:$0xff]
        %v987 = vld [vmem:[#allocation2 + $0x10] sm:$0xff]
        %v988 = vld [vmem:[#allocation2 + $0x18] sm:$0xff]
        %v989 = vld [vmem:[#allocation2 + $0x20] sm:$0xff]
        %v990 = vld [vmem:[#allocation2 + $0x28] sm:$0xff]
        %v991 = vld [vmem:[#allocation2 + $0x30] sm:$0xff]
        %v992 = vld [vmem:[#allocation2 + $0x38] sm:$0xff]
        %v993 = vld [vmem:[#allocation2 + $0x40] sm:$0xff]
        %v994 = vld [vmem:[#allocation2 + $0x48] sm:$0xff]
        %v995 = vld [vmem:[#allocation2 + $0x50] sm:$0xff]
        %v996 = vld [vmem:[#allocation2 + $0x58] sm:$0xff]
        %v997 = vld [vmem:[#allocation2 + $0x60] sm:$0xff]
        %v998 = vld [vmem:[#allocation2 + $0x68] sm:$0xff]
        %v999 = vld [vmem:[#allocation2 + $0x70] sm:$0xff]
        %v1000 = vld [vmem:[#allocation2 + $0x78] sm:$0xff]
        %v1001 = vld [vmem:[#allocation3] sm:$0xff]
        %v1002 = vld [vmem:[#allocation3 + $0x8] sm:$0xff]
        %v1003 = vld [vmem:[#allocation3 + $0x10] sm:$0xff]
        %v1004 = vld [vmem:[#allocation3 + $0x18] sm:$0xff]
        %v1005 = vld [vmem:[#allocation3 + $0x20] sm:$0xff]
        %v1006 = vld [vmem:[#allocation3 + $0x28] sm:$0xff]
        %v1007 = vld [vmem:[#allocation3 + $0x30] sm:$0xff]
        %v1008 = vld [vmem:[#allocation3 + $0x38] sm:$0xff]
        %v1009 = vld [vmem:[#allocation3 + $0x40] sm:$0xff]
        %v1010 = vld [vmem:[#allocation3 + $0x48] sm:$0xff]
        %v1011 = vld [vmem:[#allocation3 + $0x50] sm:$0xff]
        %v1012 = vld [vmem:[#allocation3 + $0x58] sm:$0xff]
        %v1013 = vld [vmem:[#allocation3 + $0x60] sm:$0xff]
        %v1014 = vld [vmem:[#allocation3 + $0x68] sm:$0xff]
        %v1015 = vld [vmem:[#allocation3 + $0x70] sm:$0xff]
        %v1016 = vld [vmem:[#allocation3 + $0x78] sm:$0xff]
        %1017 = vmatpush.xpose.msra.mxu0 %v983
        %1018 = vmatpush.xpose.msra.mxu0 %v980
        %1019 = vmatpush.xpose.msra.mxu0 %v977
        %1020 = vmatpush.xpose.msra.mxu0 %v974
        %1021 = vmatpush.xpose.msra.mxu0 %v971
        %1022 = vmatpush.xpose.msra.mxu0 %v968
        %1023 = vmatpush.xpose.msra.mxu0 %v965
        %1024 = vmatpush.xpose.msra.mxu0 %v962
        %1025 = vmatpush.xpose.msra.mxu0 %v959
        %1026 = vmatpush.xpose.msra.mxu0 %v956
        %1027 = vmatpush.xpose.msra.mxu0 %v953
        %1028 = vmatpush.xpose.msra.mxu0 %v950
        %1029 = vmatpush.xpose.msra.mxu0 %v947
        %1030 = vmatpush.xpose.msra.mxu0 %v944
        %1031 = vmatpush.xpose.msra.mxu0 %v941
        %1032 = vmatpush.xpose.msra.mxu0 %v938
        %1033 = vmatmul.f32.gmra.mxu0 %v985
        %v1034 = vpop.f32.mrf.mxu0
        %v1035 = vadd.f32 0.0, %v1034
        %1036 = vmatmul.f32.gmra.mxu0 %v986
        %v1037 = vpop.f32.mrf.mxu0
        %v1038 = vadd.f32 0.0, %v1037
        %1039 = vmatmul.f32.gmra.mxu0 %v987
        %v1040 = vpop.f32.mrf.mxu0
        %v1041 = vadd.f32 0.0, %v1040
        %1042 = vmatmul.f32.gmra.mxu0 %v988
        %v1043 = vpop.f32.mrf.mxu0
        %v1044 = vadd.f32 0.0, %v1043
        %1045 = vmatmul.f32.gmra.mxu0 %v989
        %v1046 = vpop.f32.mrf.mxu0
        %v1047 = vadd.f32 0.0, %v1046
        %1048 = vmatmul.f32.gmra.mxu0 %v990
        %v1049 = vpop.f32.mrf.mxu0
        %v1050 = vadd.f32 0.0, %v1049
        %1051 = vmatmul.f32.gmra.mxu0 %v991
        %v1052 = vpop.f32.mrf.mxu0
        %v1053 = vadd.f32 0.0, %v1052
        %1054 = vmatmul.f32.gmra.mxu0 %v992
        %v1055 = vpop.f32.mrf.mxu0
        %v1056 = vadd.f32 0.0, %v1055
        %1057 = vmatmul.f32.gmra.mxu0 %v993
        %v1058 = vpop.f32.mrf.mxu0
        %v1059 = vadd.f32 0.0, %v1058
        %1060 = vmatmul.f32.gmra.mxu0 %v994
        %v1061 = vpop.f32.mrf.mxu0
        %v1062 = vadd.f32 0.0, %v1061
        %1063 = vmatmul.f32.gmra.mxu0 %v995
        %v1064 = vpop.f32.mrf.mxu0
        %v1065 = vadd.f32 0.0, %v1064
        %1066 = vmatmul.f32.gmra.mxu0 %v996
        %v1067 = vpop.f32.mrf.mxu0
        %v1068 = vadd.f32 0.0, %v1067
        %1069 = vmatmul.f32.gmra.mxu0 %v997
        %v1070 = vpop.f32.mrf.mxu0
        %v1071 = vadd.f32 0.0, %v1070
        %1072 = vmatmul.f32.gmra.mxu0 %v998
        %v1073 = vpop.f32.mrf.mxu0
        %v1074 = vadd.f32 0.0, %v1073
        %1075 = vmatmul.f32.gmra.mxu0 %v999
        %v1076 = vpop.f32.mrf.mxu0
        %v1077 = vadd.f32 0.0, %v1076
        %1078 = vmatmul.f32.gmra.mxu0 %v1000
        %v1079 = vpop.f32.mrf.mxu0
        %v1080 = vadd.f32 0.0, %v1079
        %1081 = vdwg.mxu0
        %1082 = vmatpush.xpose.msra.mxu0 %v902
        %1083 = vmatpush.xpose.msra.mxu0 %v899
        %1084 = vmatpush.xpose.msra.mxu0 %v896
        %1085 = vmatpush.xpose.msra.mxu0 %v893
        %1086 = vmatpush.xpose.msra.mxu0 %v890
        %1087 = vmatpush.xpose.msra.mxu0 %v887
        %1088 = vmatpush.xpose.msra.mxu0 %v884
        %1089 = vmatpush.xpose.msra.mxu0 %v881
        %1090 = vmatpush.xpose.msra.mxu0 %v878
        %1091 = vmatpush.xpose.msra.mxu0 %v875
        %1092 = vmatpush.xpose.msra.mxu0 %v872
        %1093 = vmatpush.xpose.msra.mxu0 %v869
        %1094 = vmatpush.xpose.msra.mxu0 %v866
        %1095 = vmatpush.xpose.msra.mxu0 %v863
        %1096 = vmatpush.xpose.msra.mxu0 %v860
        %1097 = vmatpush.xpose.msra.mxu0 %v857
        %1098 = vmatmul.f32.gmra.mxu0 %v1001
        %v1099 = vpop.f32.mrf.mxu0
        %v1100 = vadd.f32 0.0, %v1099
        %1101 = vmatmul.f32.gmra.mxu0 %v1002
        %v1102 = vpop.f32.mrf.mxu0
        %v1103 = vadd.f32 0.0, %v1102
        %1104 = vmatmul.f32.gmra.mxu0 %v1003
        %v1105 = vpop.f32.mrf.mxu0
        %v1106 = vadd.f32 0.0, %v1105
        %1107 = vmatmul.f32.gmra.mxu0 %v1004
        %v1108 = vpop.f32.mrf.mxu0
        %v1109 = vadd.f32 0.0, %v1108
        %1110 = vmatmul.f32.gmra.mxu0 %v1005
        %v1111 = vpop.f32.mrf.mxu0
        %v1112 = vadd.f32 0.0, %v1111
        %1113 = vmatmul.f32.gmra.mxu0 %v1006
        %v1114 = vpop.f32.mrf.mxu0
        %v1115 = vadd.f32 0.0, %v1114
        %1116 = vmatmul.f32.gmra.mxu0 %v1007
        %v1117 = vpop.f32.mrf.mxu0
        %v1118 = vadd.f32 0.0, %v1117
        %1119 = vmatmul.f32.gmra.mxu0 %v1008
        %v1120 = vpop.f32.mrf.mxu0
        %v1121 = vadd.f32 0.0, %v1120
        %1122 = vmatmul.f32.gmra.mxu0 %v1009
        %v1123 = vpop.f32.mrf.mxu0
        %v1124 = vadd.f32 0.0, %v1123
        %1125 = vmatmul.f32.gmra.mxu0 %v1010
        %v1126 = vpop.f32.mrf.mxu0
        %v1127 = vadd.f32 0.0, %v1126
        %1128 = vmatmul.f32.gmra.mxu0 %v1011
        %v1129 = vpop.f32.mrf.mxu0
        %v1130 = vadd.f32 0.0, %v1129
        %1131 = vmatmul.f32.gmra.mxu0 %v1012
        %v1132 = vpop.f32.mrf.mxu0
        %v1133 = vadd.f32 0.0, %v1132
        %1134 = vmatmul.f32.gmra.mxu0 %v1013
        %v1135 = vpop.f32.mrf.mxu0
        %v1136 = vadd.f32 0.0, %v1135
        %1137 = vmatmul.f32.gmra.mxu0 %v1014
        %v1138 = vpop.f32.mrf.mxu0
        %v1139 = vadd.f32 0.0, %v1138
        %1140 = vmatmul.f32.gmra.mxu0 %v1015
        %v1141 = vpop.f32.mrf.mxu0
        %v1142 = vadd.f32 0.0, %v1141
        %1143 = vmatmul.f32.gmra.mxu0 %v1016
        %v1144 = vpop.f32.mrf.mxu0
        %v1145 = vadd.f32 0.0, %v1144
        %1146 = vdwg.mxu0
        %v1147 = vld [vmem:[%s412] sm:$0xf]
        %v1148 = vld [vmem:[%s412 + $0x4] sm:$0xf]
        %v1149 = vld [vmem:[%s412 + $0x8] sm:$0xf]
        %v1150 = vld [vmem:[%s412 + $0xc] sm:$0xf]
        %v1151 = vld [vmem:[%s412 + $0x10] sm:$0xf]
        %v1152 = vld [vmem:[%s412 + $0x14] sm:$0xf]
        %v1153 = vld [vmem:[%s412 + $0x18] sm:$0xf]
        %v1154 = vld [vmem:[%s412 + $0x1c] sm:$0xf]
        %v1155 = vld [vmem:[%s412 + $0x20] sm:$0xf]
        %v1156 = vld [vmem:[%s412 + $0x24] sm:$0xf]
        %v1157 = vld [vmem:[%s412 + $0x28] sm:$0xf]
        %v1158 = vld [vmem:[%s412 + $0x2c] sm:$0xf]
        %v1159 = vld [vmem:[%s412 + $0x30] sm:$0xf]
        %v1160 = vld [vmem:[%s412 + $0x34] sm:$0xf]
        %v1161 = vld [vmem:[%s412 + $0x38] sm:$0xf]
        %v1162 = vld [vmem:[%s412 + $0x3c] sm:$0xf]
        %v1163 = vunpack.c.l.bf16 %v1147
        %v1164 = vunpack.c.l.bf16 %v1148
        %v1165 = vunpack.c.l.bf16 %v1149
        %v1166 = vunpack.c.l.bf16 %v1150
        %v1167 = vunpack.c.l.bf16 %v1151
        %v1168 = vunpack.c.l.bf16 %v1152
        %v1169 = vunpack.c.l.bf16 %v1153
        %v1170 = vunpack.c.l.bf16 %v1154
        %v1171 = vunpack.c.l.bf16 %v1155
        %v1172 = vunpack.c.l.bf16 %v1156
        %v1173 = vunpack.c.l.bf16 %v1157
        %v1174 = vunpack.c.l.bf16 %v1158
        %v1175 = vunpack.c.l.bf16 %v1159
        %v1176 = vunpack.c.l.bf16 %v1160
        %v1177 = vunpack.c.l.bf16 %v1161
        %v1178 = vunpack.c.l.bf16 %v1162
        %v1179 = vsub.f32 0.0, %v1035
        %v1180 = vsub.f32 0.0, %v1038
        %v1181 = vsub.f32 0.0, %v1041
        %v1182 = vsub.f32 0.0, %v1044
        %v1183 = vsub.f32 0.0, %v1047
        %v1184 = vsub.f32 0.0, %v1050
        %v1185 = vsub.f32 0.0, %v1053
        %v1186 = vsub.f32 0.0, %v1056
        %v1187 = vsub.f32 0.0, %v1059
        %v1188 = vsub.f32 0.0, %v1062
        %v1189 = vsub.f32 0.0, %v1065
        %v1190 = vsub.f32 0.0, %v1068
        %v1191 = vsub.f32 0.0, %v1071
        %v1192 = vsub.f32 0.0, %v1074
        %v1193 = vsub.f32 0.0, %v1077
        %v1194 = vsub.f32 0.0, %v1080
        %v1195 = vxor.u32 %v1179, 2147483648
        %v1196 = vxor.u32 %v1180, 2147483648
        %v1197 = vxor.u32 %v1181, 2147483648
        %v1198 = vxor.u32 %v1182, 2147483648
        %v1199 = vxor.u32 %v1183, 2147483648
        %v1200 = vxor.u32 %v1184, 2147483648
        %v1201 = vxor.u32 %v1185, 2147483648
        %v1202 = vxor.u32 %v1186, 2147483648
        %v1203 = vxor.u32 %v1187, 2147483648
        %v1204 = vxor.u32 %v1188, 2147483648
        %v1205 = vxor.u32 %v1189, 2147483648
        %v1206 = vxor.u32 %v1190, 2147483648
        %v1207 = vxor.u32 %v1191, 2147483648
        %v1208 = vxor.u32 %v1192, 2147483648
        %v1209 = vxor.u32 %v1193, 2147483648
        %v1210 = vxor.u32 %v1194, 2147483648
        %v1211 = vmul.f32 %v1195, 1.442695
        %v1212 = vpow.pop %v1211
        %v1213 = vmul.f32 %v1196, 1.442695
        %v1214 = vpow.pop %v1213
        %v1215 = vmul.f32 %v1197, 1.442695
        %v1216 = vpow.pop %v1215
        %v1217 = vmul.f32 %v1198, 1.442695
        %v1218 = vpow.pop %v1217
        %v1219 = vmul.f32 %v1199, 1.442695
        %v1220 = vpow.pop %v1219
        %v1221 = vmul.f32 %v1200, 1.442695
        %v1222 = vpow.pop %v1221
        %v1223 = vmul.f32 %v1201, 1.442695
        %v1224 = vpow.pop %v1223
        %v1225 = vmul.f32 %v1202, 1.442695
        %v1226 = vpow.pop %v1225
        %v1227 = vmul.f32 %v1203, 1.442695
        %v1228 = vpow.pop %v1227
        %v1229 = vmul.f32 %v1204, 1.442695
        %v1230 = vpow.pop %v1229
        %v1231 = vmul.f32 %v1205, 1.442695
        %v1232 = vpow.pop %v1231
        %v1233 = vmul.f32 %v1206, 1.442695
        %v1234 = vpow.pop %v1233
        %v1235 = vmul.f32 %v1207, 1.442695
        %v1236 = vpow.pop %v1235
        %v1237 = vmul.f32 %v1208, 1.442695
        %v1238 = vpow.pop %v1237
        %v1239 = vmul.f32 %v1209, 1.442695
        %v1240 = vpow.pop %v1239
        %v1241 = vmul.f32 %v1210, 1.442695
        %v1242 = vpow.pop %v1241
        %v1243 = vadd.f32 %v1212, 1.0
        %v1244 = vadd.f32 %v1214, 1.0
        %v1245 = vadd.f32 %v1216, 1.0
        %v1246 = vadd.f32 %v1218, 1.0
        %v1247 = vadd.f32 %v1220, 1.0
        %v1248 = vadd.f32 %v1222, 1.0
        %v1249 = vadd.f32 %v1224, 1.0
        %v1250 = vadd.f32 %v1226, 1.0
        %v1251 = vadd.f32 %v1228, 1.0
        %v1252 = vadd.f32 %v1230, 1.0
        %v1253 = vadd.f32 %v1232, 1.0
        %v1254 = vadd.f32 %v1234, 1.0
        %v1255 = vadd.f32 %v1236, 1.0
        %v1256 = vadd.f32 %v1238, 1.0
        %v1257 = vadd.f32 %v1240, 1.0
        %v1258 = vadd.f32 %v1242, 1.0
        %v1259 = vrcp.pop %v1243
        %v1260 = vmul.f32 %v1243, %v1259
        %v1261 = vsub.f32 1.0, %v1260
        %v1262 = vmul.f32 %v1259, %v1261
        %v1263 = vadd.f32 %v1259, %v1262
        %vm1264 = vweird.f32 %v1243
        %vm1265 = vweird.f32 %v1259
        %vm1266 = vmor %vm1264, %vm1265
        %v1267 = vsel %vm1266, %v1259, %v1263
        %v1268 = vand.u32 2147483647, %v1243
        %vm1269 = vcmp.eq.f32.partialorder %v1268, 8.507059e+37
        %v1270 = vand.u32 %v1243, 2147483648
        %v1271 = vor.u32 1.1754944e-38, %v1270
        %v1272 = vsel %vm1269, %v1271, %v1267
        %v1273 = vmul.f32 1.0, %v1272
        %v1274 = vrcp.pop %v1244
        %v1275 = vmul.f32 %v1244, %v1274
        %v1276 = vsub.f32 1.0, %v1275
        %v1277 = vmul.f32 %v1274, %v1276
        %v1278 = vadd.f32 %v1274, %v1277
        %vm1279 = vweird.f32 %v1244
        %vm1280 = vweird.f32 %v1274
        %vm1281 = vmor %vm1279, %vm1280
        %v1282 = vsel %vm1281, %v1274, %v1278
        %v1283 = vand.u32 2147483647, %v1244
        %vm1284 = vcmp.eq.f32.partialorder %v1283, 8.507059e+37
        %v1285 = vand.u32 %v1244, 2147483648
        %v1286 = vor.u32 1.1754944e-38, %v1285
        %v1287 = vsel %vm1284, %v1286, %v1282
        %v1288 = vmul.f32 1.0, %v1287
        %v1289 = vrcp.pop %v1245
        %v1290 = vmul.f32 %v1245, %v1289
        %v1291 = vsub.f32 1.0, %v1290
        %v1292 = vmul.f32 %v1289, %v1291
        %v1293 = vadd.f32 %v1289, %v1292
        %vm1294 = vweird.f32 %v1245
        %vm1295 = vweird.f32 %v1289
        %vm1296 = vmor %vm1294, %vm1295
        %v1297 = vsel %vm1296, %v1289, %v1293
        %v1298 = vand.u32 2147483647, %v1245
        %vm1299 = vcmp.eq.f32.partialorder %v1298, 8.507059e+37
        %v1300 = vand.u32 %v1245, 2147483648
        %v1301 = vor.u32 1.1754944e-38, %v1300
        %v1302 = vsel %vm1299, %v1301, %v1297
        %v1303 = vmul.f32 1.0, %v1302
        %v1304 = vrcp.pop %v1246
        %v1305 = vmul.f32 %v1246, %v1304
        %v1306 = vsub.f32 1.0, %v1305
        %v1307 = vmul.f32 %v1304, %v1306
        %v1308 = vadd.f32 %v1304, %v1307
        %vm1309 = vweird.f32 %v1246
        %vm1310 = vweird.f32 %v1304
        %vm1311 = vmor %vm1309, %vm1310
        %v1312 = vsel %vm1311, %v1304, %v1308
        %v1313 = vand.u32 2147483647, %v1246
        %vm1314 = vcmp.eq.f32.partialorder %v1313, 8.507059e+37
        %v1315 = vand.u32 %v1246, 2147483648
        %v1316 = vor.u32 1.1754944e-38, %v1315
        %v1317 = vsel %vm1314, %v1316, %v1312
        %v1318 = vmul.f32 1.0, %v1317
        %v1319 = vrcp.pop %v1247
        %v1320 = vmul.f32 %v1247, %v1319
        %v1321 = vsub.f32 1.0, %v1320
        %v1322 = vmul.f32 %v1319, %v1321
        %v1323 = vadd.f32 %v1319, %v1322
        %vm1324 = vweird.f32 %v1247
        %vm1325 = vweird.f32 %v1319
        %vm1326 = vmor %vm1324, %vm1325
        %v1327 = vsel %vm1326, %v1319, %v1323
        %v1328 = vand.u32 2147483647, %v1247
        %vm1329 = vcmp.eq.f32.partialorder %v1328, 8.507059e+37
        %v1330 = vand.u32 %v1247, 2147483648
        %v1331 = vor.u32 1.1754944e-38, %v1330
        %v1332 = vsel %vm1329, %v1331, %v1327
        %v1333 = vmul.f32 1.0, %v1332
        %v1334 = vrcp.pop %v1248
        %v1335 = vmul.f32 %v1248, %v1334
        %v1336 = vsub.f32 1.0, %v1335
        %v1337 = vmul.f32 %v1334, %v1336
        %v1338 = vadd.f32 %v1334, %v1337
        %vm1339 = vweird.f32 %v1248
        %vm1340 = vweird.f32 %v1334
        %vm1341 = vmor %vm1339, %vm1340
        %v1342 = vsel %vm1341, %v1334, %v1338
        %v1343 = vand.u32 2147483647, %v1248
        %vm1344 = vcmp.eq.f32.partialorder %v1343, 8.507059e+37
        %v1345 = vand.u32 %v1248, 2147483648
        %v1346 = vor.u32 1.1754944e-38, %v1345
        %v1347 = vsel %vm1344, %v1346, %v1342
        %v1348 = vmul.f32 1.0, %v1347
        %v1349 = vrcp.pop %v1249
        %v1350 = vmul.f32 %v1249, %v1349
        %v1351 = vsub.f32 1.0, %v1350
        %v1352 = vmul.f32 %v1349, %v1351
        %v1353 = vadd.f32 %v1349, %v1352
        %vm1354 = vweird.f32 %v1249
        %vm1355 = vweird.f32 %v1349
        %vm1356 = vmor %vm1354, %vm1355
        %v1357 = vsel %vm1356, %v1349, %v1353
        %v1358 = vand.u32 2147483647, %v1249
        %vm1359 = vcmp.eq.f32.partialorder %v1358, 8.507059e+37
        %v1360 = vand.u32 %v1249, 2147483648
        %v1361 = vor.u32 1.1754944e-38, %v1360
        %v1362 = vsel %vm1359, %v1361, %v1357
        %v1363 = vmul.f32 1.0, %v1362
        %v1364 = vrcp.pop %v1250
        %v1365 = vmul.f32 %v1250, %v1364
        %v1366 = vsub.f32 1.0, %v1365
        %v1367 = vmul.f32 %v1364, %v1366
        %v1368 = vadd.f32 %v1364, %v1367
        %vm1369 = vweird.f32 %v1250
        %vm1370 = vweird.f32 %v1364
        %vm1371 = vmor %vm1369, %vm1370
        %v1372 = vsel %vm1371, %v1364, %v1368
        %v1373 = vand.u32 2147483647, %v1250
        %vm1374 = vcmp.eq.f32.partialorder %v1373, 8.507059e+37
        %v1375 = vand.u32 %v1250, 2147483648
        %v1376 = vor.u32 1.1754944e-38, %v1375
        %v1377 = vsel %vm1374, %v1376, %v1372
        %v1378 = vmul.f32 1.0, %v1377
        %v1379 = vrcp.pop %v1251
        %v1380 = vmul.f32 %v1251, %v1379
        %v1381 = vsub.f32 1.0, %v1380
        %v1382 = vmul.f32 %v1379, %v1381
        %v1383 = vadd.f32 %v1379, %v1382
        %vm1384 = vweird.f32 %v1251
        %vm1385 = vweird.f32 %v1379
        %vm1386 = vmor %vm1384, %vm1385
        %v1387 = vsel %vm1386, %v1379, %v1383
        %v1388 = vand.u32 2147483647, %v1251
        %vm1389 = vcmp.eq.f32.partialorder %v1388, 8.507059e+37
        %v1390 = vand.u32 %v1251, 2147483648
        %v1391 = vor.u32 1.1754944e-38, %v1390
        %v1392 = vsel %vm1389, %v1391, %v1387
        %v1393 = vmul.f32 1.0, %v1392
        %v1394 = vrcp.pop %v1252
        %v1395 = vmul.f32 %v1252, %v1394
        %v1396 = vsub.f32 1.0, %v1395
        %v1397 = vmul.f32 %v1394, %v1396
        %v1398 = vadd.f32 %v1394, %v1397
        %vm1399 = vweird.f32 %v1252
        %vm1400 = vweird.f32 %v1394
        %vm1401 = vmor %vm1399, %vm1400
        %v1402 = vsel %vm1401, %v1394, %v1398
        %v1403 = vand.u32 2147483647, %v1252
        %vm1404 = vcmp.eq.f32.partialorder %v1403, 8.507059e+37
        %v1405 = vand.u32 %v1252, 2147483648
        %v1406 = vor.u32 1.1754944e-38, %v1405
        %v1407 = vsel %vm1404, %v1406, %v1402
        %v1408 = vmul.f32 1.0, %v1407
        %v1409 = vrcp.pop %v1253
        %v1410 = vmul.f32 %v1253, %v1409
        %v1411 = vsub.f32 1.0, %v1410
        %v1412 = vmul.f32 %v1409, %v1411
        %v1413 = vadd.f32 %v1409, %v1412
        %vm1414 = vweird.f32 %v1253
        %vm1415 = vweird.f32 %v1409
        %vm1416 = vmor %vm1414, %vm1415
        %v1417 = vsel %vm1416, %v1409, %v1413
        %v1418 = vand.u32 2147483647, %v1253
        %vm1419 = vcmp.eq.f32.partialorder %v1418, 8.507059e+37
        %v1420 = vand.u32 %v1253, 2147483648
        %v1421 = vor.u32 1.1754944e-38, %v1420
        %v1422 = vsel %vm1419, %v1421, %v1417
        %v1423 = vmul.f32 1.0, %v1422
        %v1424 = vrcp.pop %v1254
        %v1425 = vmul.f32 %v1254, %v1424
        %v1426 = vsub.f32 1.0, %v1425
        %v1427 = vmul.f32 %v1424, %v1426
        %v1428 = vadd.f32 %v1424, %v1427
        %vm1429 = vweird.f32 %v1254
        %vm1430 = vweird.f32 %v1424
        %vm1431 = vmor %vm1429, %vm1430
        %v1432 = vsel %vm1431, %v1424, %v1428
        %v1433 = vand.u32 2147483647, %v1254
        %vm1434 = vcmp.eq.f32.partialorder %v1433, 8.507059e+37
        %v1435 = vand.u32 %v1254, 2147483648
        %v1436 = vor.u32 1.1754944e-38, %v1435
        %v1437 = vsel %vm1434, %v1436, %v1432
        %v1438 = vmul.f32 1.0, %v1437
        %v1439 = vrcp.pop %v1255
        %v1440 = vmul.f32 %v1255, %v1439
        %v1441 = vsub.f32 1.0, %v1440
        %v1442 = vmul.f32 %v1439, %v1441
        %v1443 = vadd.f32 %v1439, %v1442
        %vm1444 = vweird.f32 %v1255
        %vm1445 = vweird.f32 %v1439
        %vm1446 = vmor %vm1444, %vm1445
        %v1447 = vsel %vm1446, %v1439, %v1443
        %v1448 = vand.u32 2147483647, %v1255
        %vm1449 = vcmp.eq.f32.partialorder %v1448, 8.507059e+37
        %v1450 = vand.u32 %v1255, 2147483648
        %v1451 = vor.u32 1.1754944e-38, %v1450
        %v1452 = vsel %vm1449, %v1451, %v1447
        %v1453 = vmul.f32 1.0, %v1452
        %v1454 = vrcp.pop %v1256
        %v1455 = vmul.f32 %v1256, %v1454
        %v1456 = vsub.f32 1.0, %v1455
        %v1457 = vmul.f32 %v1454, %v1456
        %v1458 = vadd.f32 %v1454, %v1457
        %vm1459 = vweird.f32 %v1256
        %vm1460 = vweird.f32 %v1454
        %vm1461 = vmor %vm1459, %vm1460
        %v1462 = vsel %vm1461, %v1454, %v1458
        %v1463 = vand.u32 2147483647, %v1256
        %vm1464 = vcmp.eq.f32.partialorder %v1463, 8.507059e+37
        %v1465 = vand.u32 %v1256, 2147483648
        %v1466 = vor.u32 1.1754944e-38, %v1465
        %v1467 = vsel %vm1464, %v1466, %v1462
        %v1468 = vmul.f32 1.0, %v1467
        %v1469 = vrcp.pop %v1257
        %v1470 = vmul.f32 %v1257, %v1469
        %v1471 = vsub.f32 1.0, %v1470
        %v1472 = vmul.f32 %v1469, %v1471
        %v1473 = vadd.f32 %v1469, %v1472
        %vm1474 = vweird.f32 %v1257
        %vm1475 = vweird.f32 %v1469
        %vm1476 = vmor %vm1474, %vm1475
        %v1477 = vsel %vm1476, %v1469, %v1473
        %v1478 = vand.u32 2147483647, %v1257
        %vm1479 = vcmp.eq.f32.partialorder %v1478, 8.507059e+37
        %v1480 = vand.u32 %v1257, 2147483648
        %v1481 = vor.u32 1.1754944e-38, %v1480
        %v1482 = vsel %vm1479, %v1481, %v1477
        %v1483 = vmul.f32 1.0, %v1482
        %v1484 = vrcp.pop %v1258
        %v1485 = vmul.f32 %v1258, %v1484
        %v1486 = vsub.f32 1.0, %v1485
        %v1487 = vmul.f32 %v1484, %v1486
        %v1488 = vadd.f32 %v1484, %v1487
        %vm1489 = vweird.f32 %v1258
        %vm1490 = vweird.f32 %v1484
        %vm1491 = vmor %vm1489, %vm1490
        %v1492 = vsel %vm1491, %v1484, %v1488
        %v1493 = vand.u32 2147483647, %v1258
        %vm1494 = vcmp.eq.f32.partialorder %v1493, 8.507059e+37
        %v1495 = vand.u32 %v1258, 2147483648
        %v1496 = vor.u32 1.1754944e-38, %v1495
        %v1497 = vsel %vm1494, %v1496, %v1492
        %v1498 = vmul.f32 1.0, %v1497
        %v1499 = vmul.f32 %v1273, %v1163
        %v1500 = vmul.f32 %v1288, %v1164
        %v1501 = vmul.f32 %v1303, %v1165
        %v1502 = vmul.f32 %v1318, %v1166
        %v1503 = vmul.f32 %v1333, %v1167
        %v1504 = vmul.f32 %v1348, %v1168
        %v1505 = vmul.f32 %v1363, %v1169
        %v1506 = vmul.f32 %v1378, %v1170
        %v1507 = vmul.f32 %v1393, %v1171
        %v1508 = vmul.f32 %v1408, %v1172
        %v1509 = vmul.f32 %v1423, %v1173
        %v1510 = vmul.f32 %v1438, %v1174
        %v1511 = vmul.f32 %v1453, %v1175
        %v1512 = vmul.f32 %v1468, %v1176
        %v1513 = vmul.f32 %v1483, %v1177
        %v1514 = vmul.f32 %v1498, %v1178
        %v1515 = vxor.u32 %v1100, 2147483648
        %v1516 = vxor.u32 %v1103, 2147483648
        %v1517 = vxor.u32 %v1106, 2147483648
        %v1518 = vxor.u32 %v1109, 2147483648
        %v1519 = vxor.u32 %v1112, 2147483648
        %v1520 = vxor.u32 %v1115, 2147483648
        %v1521 = vxor.u32 %v1118, 2147483648
        %v1522 = vxor.u32 %v1121, 2147483648
        %v1523 = vxor.u32 %v1124, 2147483648
        %v1524 = vxor.u32 %v1127, 2147483648
        %v1525 = vxor.u32 %v1130, 2147483648
        %v1526 = vxor.u32 %v1133, 2147483648
        %v1527 = vxor.u32 %v1136, 2147483648
        %v1528 = vxor.u32 %v1139, 2147483648
        %v1529 = vxor.u32 %v1142, 2147483648
        %v1530 = vxor.u32 %v1145, 2147483648
        %v1531 = vmul.f32 %v1515, 1.442695
        %v1532 = vpow.pop %v1531
        %v1533 = vmul.f32 %v1516, 1.442695
        %v1534 = vpow.pop %v1533
        %v1535 = vmul.f32 %v1517, 1.442695
        %v1536 = vpow.pop %v1535
        %v1537 = vmul.f32 %v1518, 1.442695
        %v1538 = vpow.pop %v1537
        %v1539 = vmul.f32 %v1519, 1.442695
        %v1540 = vpow.pop %v1539
        %v1541 = vmul.f32 %v1520, 1.442695
        %v1542 = vpow.pop %v1541
        %v1543 = vmul.f32 %v1521, 1.442695
        %v1544 = vpow.pop %v1543
        %v1545 = vmul.f32 %v1522, 1.442695
        %v1546 = vpow.pop %v1545
        %v1547 = vmul.f32 %v1523, 1.442695
        %v1548 = vpow.pop %v1547
        %v1549 = vmul.f32 %v1524, 1.442695
        %v1550 = vpow.pop %v1549
        %v1551 = vmul.f32 %v1525, 1.442695
        %v1552 = vpow.pop %v1551
        %v1553 = vmul.f32 %v1526, 1.442695
        %v1554 = vpow.pop %v1553
        %v1555 = vmul.f32 %v1527, 1.442695
        %v1556 = vpow.pop %v1555
        %v1557 = vmul.f32 %v1528, 1.442695
        %v1558 = vpow.pop %v1557
        %v1559 = vmul.f32 %v1529, 1.442695
        %v1560 = vpow.pop %v1559
        %v1561 = vmul.f32 %v1530, 1.442695
        %v1562 = vpow.pop %v1561
        %v1563 = vadd.f32 %v1532, 1.0
        %v1564 = vadd.f32 %v1534, 1.0
        %v1565 = vadd.f32 %v1536, 1.0
        %v1566 = vadd.f32 %v1538, 1.0
        %v1567 = vadd.f32 %v1540, 1.0
        %v1568 = vadd.f32 %v1542, 1.0
        %v1569 = vadd.f32 %v1544, 1.0
        %v1570 = vadd.f32 %v1546, 1.0
        %v1571 = vadd.f32 %v1548, 1.0
        %v1572 = vadd.f32 %v1550, 1.0
        %v1573 = vadd.f32 %v1552, 1.0
        %v1574 = vadd.f32 %v1554, 1.0
        %v1575 = vadd.f32 %v1556, 1.0
        %v1576 = vadd.f32 %v1558, 1.0
        %v1577 = vadd.f32 %v1560, 1.0
        %v1578 = vadd.f32 %v1562, 1.0
        %v1579 = vrcp.pop %v1563
        %v1580 = vmul.f32 %v1563, %v1579
        %v1581 = vsub.f32 1.0, %v1580
        %v1582 = vmul.f32 %v1579, %v1581
        %v1583 = vadd.f32 %v1579, %v1582
        %vm1584 = vweird.f32 %v1563
        %vm1585 = vweird.f32 %v1579
        %vm1586 = vmor %vm1584, %vm1585
        %v1587 = vsel %vm1586, %v1579, %v1583
        %v1588 = vand.u32 2147483647, %v1563
        %vm1589 = vcmp.eq.f32.partialorder %v1588, 8.507059e+37
        %v1590 = vand.u32 %v1563, 2147483648
        %v1591 = vor.u32 1.1754944e-38, %v1590
        %v1592 = vsel %vm1589, %v1591, %v1587
        %v1593 = vmul.f32 1.0, %v1592
        %v1594 = vrcp.pop %v1564
        %v1595 = vmul.f32 %v1564, %v1594
        %v1596 = vsub.f32 1.0, %v1595
        %v1597 = vmul.f32 %v1594, %v1596
        %v1598 = vadd.f32 %v1594, %v1597
        %vm1599 = vweird.f32 %v1564
        %vm1600 = vweird.f32 %v1594
        %vm1601 = vmor %vm1599, %vm1600
        %v1602 = vsel %vm1601, %v1594, %v1598
        %v1603 = vand.u32 2147483647, %v1564
        %vm1604 = vcmp.eq.f32.partialorder %v1603, 8.507059e+37
        %v1605 = vand.u32 %v1564, 2147483648
        %v1606 = vor.u32 1.1754944e-38, %v1605
        %v1607 = vsel %vm1604, %v1606, %v1602
        %v1608 = vmul.f32 1.0, %v1607
        %v1609 = vrcp.pop %v1565
        %v1610 = vmul.f32 %v1565, %v1609
        %v1611 = vsub.f32 1.0, %v1610
        %v1612 = vmul.f32 %v1609, %v1611
        %v1613 = vadd.f32 %v1609, %v1612
        %vm1614 = vweird.f32 %v1565
        %vm1615 = vweird.f32 %v1609
        %vm1616 = vmor %vm1614, %vm1615
        %v1617 = vsel %vm1616, %v1609, %v1613
        %v1618 = vand.u32 2147483647, %v1565
        %vm1619 = vcmp.eq.f32.partialorder %v1618, 8.507059e+37
        %v1620 = vand.u32 %v1565, 2147483648
        %v1621 = vor.u32 1.1754944e-38, %v1620
        %v1622 = vsel %vm1619, %v1621, %v1617
        %v1623 = vmul.f32 1.0, %v1622
        %v1624 = vrcp.pop %v1566
        %v1625 = vmul.f32 %v1566, %v1624
        %v1626 = vsub.f32 1.0, %v1625
        %v1627 = vmul.f32 %v1624, %v1626
        %v1628 = vadd.f32 %v1624, %v1627
        %vm1629 = vweird.f32 %v1566
        %vm1630 = vweird.f32 %v1624
        %vm1631 = vmor %vm1629, %vm1630
        %v1632 = vsel %vm1631, %v1624, %v1628
        %v1633 = vand.u32 2147483647, %v1566
        %vm1634 = vcmp.eq.f32.partialorder %v1633, 8.507059e+37
        %v1635 = vand.u32 %v1566, 2147483648
        %v1636 = vor.u32 1.1754944e-38, %v1635
        %v1637 = vsel %vm1634, %v1636, %v1632
        %v1638 = vmul.f32 1.0, %v1637
        %v1639 = vrcp.pop %v1567
        %v1640 = vmul.f32 %v1567, %v1639
        %v1641 = vsub.f32 1.0, %v1640
        %v1642 = vmul.f32 %v1639, %v1641
        %v1643 = vadd.f32 %v1639, %v1642
        %vm1644 = vweird.f32 %v1567
        %vm1645 = vweird.f32 %v1639
        %vm1646 = vmor %vm1644, %vm1645
        %v1647 = vsel %vm1646, %v1639, %v1643
        %v1648 = vand.u32 2147483647, %v1567
        %vm1649 = vcmp.eq.f32.partialorder %v1648, 8.507059e+37
        %v1650 = vand.u32 %v1567, 2147483648
        %v1651 = vor.u32 1.1754944e-38, %v1650
        %v1652 = vsel %vm1649, %v1651, %v1647
        %v1653 = vmul.f32 1.0, %v1652
        %v1654 = vrcp.pop %v1568
        %v1655 = vmul.f32 %v1568, %v1654
        %v1656 = vsub.f32 1.0, %v1655
        %v1657 = vmul.f32 %v1654, %v1656
        %v1658 = vadd.f32 %v1654, %v1657
        %vm1659 = vweird.f32 %v1568
        %vm1660 = vweird.f32 %v1654
        %vm1661 = vmor %vm1659, %vm1660
        %v1662 = vsel %vm1661, %v1654, %v1658
        %v1663 = vand.u32 2147483647, %v1568
        %vm1664 = vcmp.eq.f32.partialorder %v1663, 8.507059e+37
        %v1665 = vand.u32 %v1568, 2147483648
        %v1666 = vor.u32 1.1754944e-38, %v1665
        %v1667 = vsel %vm1664, %v1666, %v1662
        %v1668 = vmul.f32 1.0, %v1667
        %v1669 = vrcp.pop %v1569
        %v1670 = vmul.f32 %v1569, %v1669
        %v1671 = vsub.f32 1.0, %v1670
        %v1672 = vmul.f32 %v1669, %v1671
        %v1673 = vadd.f32 %v1669, %v1672
        %vm1674 = vweird.f32 %v1569
        %vm1675 = vweird.f32 %v1669
        %vm1676 = vmor %vm1674, %vm1675
        %v1677 = vsel %vm1676, %v1669, %v1673
        %v1678 = vand.u32 2147483647, %v1569
        %vm1679 = vcmp.eq.f32.partialorder %v1678, 8.507059e+37
        %v1680 = vand.u32 %v1569, 2147483648
        %v1681 = vor.u32 1.1754944e-38, %v1680
        %v1682 = vsel %vm1679, %v1681, %v1677
        %v1683 = vmul.f32 1.0, %v1682
        %v1684 = vrcp.pop %v1570
        %v1685 = vmul.f32 %v1570, %v1684
        %v1686 = vsub.f32 1.0, %v1685
        %v1687 = vmul.f32 %v1684, %v1686
        %v1688 = vadd.f32 %v1684, %v1687
        %vm1689 = vweird.f32 %v1570
        %vm1690 = vweird.f32 %v1684
        %vm1691 = vmor %vm1689, %vm1690
        %v1692 = vsel %vm1691, %v1684, %v1688
        %v1693 = vand.u32 2147483647, %v1570
        %vm1694 = vcmp.eq.f32.partialorder %v1693, 8.507059e+37
        %v1695 = vand.u32 %v1570, 2147483648
        %v1696 = vor.u32 1.1754944e-38, %v1695
        %v1697 = vsel %vm1694, %v1696, %v1692
        %v1698 = vmul.f32 1.0, %v1697
        %v1699 = vrcp.pop %v1571
        %v1700 = vmul.f32 %v1571, %v1699
        %v1701 = vsub.f32 1.0, %v1700
        %v1702 = vmul.f32 %v1699, %v1701
        %v1703 = vadd.f32 %v1699, %v1702
        %vm1704 = vweird.f32 %v1571
        %vm1705 = vweird.f32 %v1699
        %vm1706 = vmor %vm1704, %vm1705
        %v1707 = vsel %vm1706, %v1699, %v1703
        %v1708 = vand.u32 2147483647, %v1571
        %vm1709 = vcmp.eq.f32.partialorder %v1708, 8.507059e+37
        %v1710 = vand.u32 %v1571, 2147483648
        %v1711 = vor.u32 1.1754944e-38, %v1710
        %v1712 = vsel %vm1709, %v1711, %v1707
        %v1713 = vmul.f32 1.0, %v1712
        %v1714 = vrcp.pop %v1572
        %v1715 = vmul.f32 %v1572, %v1714
        %v1716 = vsub.f32 1.0, %v1715
        %v1717 = vmul.f32 %v1714, %v1716
        %v1718 = vadd.f32 %v1714, %v1717
        %vm1719 = vweird.f32 %v1572
        %vm1720 = vweird.f32 %v1714
        %vm1721 = vmor %vm1719, %vm1720
        %v1722 = vsel %vm1721, %v1714, %v1718
        %v1723 = vand.u32 2147483647, %v1572
        %vm1724 = vcmp.eq.f32.partialorder %v1723, 8.507059e+37
        %v1725 = vand.u32 %v1572, 2147483648
        %v1726 = vor.u32 1.1754944e-38, %v1725
        %v1727 = vsel %vm1724, %v1726, %v1722
        %v1728 = vmul.f32 1.0, %v1727
        %v1729 = vrcp.pop %v1573
        %v1730 = vmul.f32 %v1573, %v1729
        %v1731 = vsub.f32 1.0, %v1730
        %v1732 = vmul.f32 %v1729, %v1731
        %v1733 = vadd.f32 %v1729, %v1732
        %vm1734 = vweird.f32 %v1573
        %vm1735 = vweird.f32 %v1729
        %vm1736 = vmor %vm1734, %vm1735
        %v1737 = vsel %vm1736, %v1729, %v1733
        %v1738 = vand.u32 2147483647, %v1573
        %vm1739 = vcmp.eq.f32.partialorder %v1738, 8.507059e+37
        %v1740 = vand.u32 %v1573, 2147483648
        %v1741 = vor.u32 1.1754944e-38, %v1740
        %v1742 = vsel %vm1739, %v1741, %v1737
        %v1743 = vmul.f32 1.0, %v1742
        %v1744 = vrcp.pop %v1574
        %v1745 = vmul.f32 %v1574, %v1744
        %v1746 = vsub.f32 1.0, %v1745
        %v1747 = vmul.f32 %v1744, %v1746
        %v1748 = vadd.f32 %v1744, %v1747
        %vm1749 = vweird.f32 %v1574
        %vm1750 = vweird.f32 %v1744
        %vm1751 = vmor %vm1749, %vm1750
        %v1752 = vsel %vm1751, %v1744, %v1748
        %v1753 = vand.u32 2147483647, %v1574
        %vm1754 = vcmp.eq.f32.partialorder %v1753, 8.507059e+37
        %v1755 = vand.u32 %v1574, 2147483648
        %v1756 = vor.u32 1.1754944e-38, %v1755
        %v1757 = vsel %vm1754, %v1756, %v1752
        %v1758 = vmul.f32 1.0, %v1757
        %v1759 = vrcp.pop %v1575
        %v1760 = vmul.f32 %v1575, %v1759
        %v1761 = vsub.f32 1.0, %v1760
        %v1762 = vmul.f32 %v1759, %v1761
        %v1763 = vadd.f32 %v1759, %v1762
        %vm1764 = vweird.f32 %v1575
        %vm1765 = vweird.f32 %v1759
        %vm1766 = vmor %vm1764, %vm1765
        %v1767 = vsel %vm1766, %v1759, %v1763
        %v1768 = vand.u32 2147483647, %v1575
        %vm1769 = vcmp.eq.f32.partialorder %v1768, 8.507059e+37
        %v1770 = vand.u32 %v1575, 2147483648
        %v1771 = vor.u32 1.1754944e-38, %v1770
        %v1772 = vsel %vm1769, %v1771, %v1767
        %v1773 = vmul.f32 1.0, %v1772
        %v1774 = vrcp.pop %v1576
        %v1775 = vmul.f32 %v1576, %v1774
        %v1776 = vsub.f32 1.0, %v1775
        %v1777 = vmul.f32 %v1774, %v1776
        %v1778 = vadd.f32 %v1774, %v1777
        %vm1779 = vweird.f32 %v1576
        %vm1780 = vweird.f32 %v1774
        %vm1781 = vmor %vm1779, %vm1780
        %v1782 = vsel %vm1781, %v1774, %v1778
        %v1783 = vand.u32 2147483647, %v1576
        %vm1784 = vcmp.eq.f32.partialorder %v1783, 8.507059e+37
        %v1785 = vand.u32 %v1576, 2147483648
        %v1786 = vor.u32 1.1754944e-38, %v1785
        %v1787 = vsel %vm1784, %v1786, %v1782
        %v1788 = vmul.f32 1.0, %v1787
        %v1789 = vrcp.pop %v1577
        %v1790 = vmul.f32 %v1577, %v1789
        %v1791 = vsub.f32 1.0, %v1790
        %v1792 = vmul.f32 %v1789, %v1791
        %v1793 = vadd.f32 %v1789, %v1792
        %vm1794 = vweird.f32 %v1577
        %vm1795 = vweird.f32 %v1789
        %vm1796 = vmor %vm1794, %vm1795
        %v1797 = vsel %vm1796, %v1789, %v1793
        %v1798 = vand.u32 2147483647, %v1577
        %vm1799 = vcmp.eq.f32.partialorder %v1798, 8.507059e+37
        %v1800 = vand.u32 %v1577, 2147483648
        %v1801 = vor.u32 1.1754944e-38, %v1800
        %v1802 = vsel %vm1799, %v1801, %v1797
        %v1803 = vmul.f32 1.0, %v1802
        %v1804 = vrcp.pop %v1578
        %v1805 = vmul.f32 %v1578, %v1804
        %v1806 = vsub.f32 1.0, %v1805
        %v1807 = vmul.f32 %v1804, %v1806
        %v1808 = vadd.f32 %v1804, %v1807
        %vm1809 = vweird.f32 %v1578
        %vm1810 = vweird.f32 %v1804
        %vm1811 = vmor %vm1809, %vm1810
        %v1812 = vsel %vm1811, %v1804, %v1808
        %v1813 = vand.u32 2147483647, %v1578
        %vm1814 = vcmp.eq.f32.partialorder %v1813, 8.507059e+37
        %v1815 = vand.u32 %v1578, 2147483648
        %v1816 = vor.u32 1.1754944e-38, %v1815
        %v1817 = vsel %vm1814, %v1816, %v1812
        %v1818 = vmul.f32 1.0, %v1817
        %v1819 = vmul.f32 %v1593, %v1163
        %v1820 = vmul.f32 %v1608, %v1164
        %v1821 = vmul.f32 %v1623, %v1165
        %v1822 = vmul.f32 %v1638, %v1166
        %v1823 = vmul.f32 %v1653, %v1167
        %v1824 = vmul.f32 %v1668, %v1168
        %v1825 = vmul.f32 %v1683, %v1169
        %v1826 = vmul.f32 %v1698, %v1170
        %v1827 = vmul.f32 %v1713, %v1171
        %v1828 = vmul.f32 %v1728, %v1172
        %v1829 = vmul.f32 %v1743, %v1173
        %v1830 = vmul.f32 %v1758, %v1174
        %v1831 = vmul.f32 %v1773, %v1175
        %v1832 = vmul.f32 %v1788, %v1176
        %v1833 = vmul.f32 %v1803, %v1177
        %v1834 = vmul.f32 %v1818, %v1178
        %v1835 = vld [vmem:[#allocation5] sm:$0xff]
        %v1836 = vld [vmem:[#allocation5 + $0x8] sm:$0xff]
        %v1837 = vld [vmem:[#allocation5 + $0x10] sm:$0xff]
        %v1838 = vld [vmem:[#allocation5 + $0x18] sm:$0xff]
        %v1839 = vld [vmem:[#allocation5 + $0x20] sm:$0xff]
        %v1840 = vld [vmem:[#allocation5 + $0x28] sm:$0xff]
        %v1841 = vld [vmem:[#allocation5 + $0x30] sm:$0xff]
        %v1842 = vld [vmem:[#allocation5 + $0x38] sm:$0xff]
        %v1843 = vld [vmem:[#allocation5 + $0x40] sm:$0xff]
        %v1844 = vld [vmem:[#allocation5 + $0x48] sm:$0xff]
        %v1845 = vld [vmem:[#allocation5 + $0x50] sm:$0xff]
        %v1846 = vld [vmem:[#allocation5 + $0x58] sm:$0xff]
        %v1847 = vld [vmem:[#allocation5 + $0x60] sm:$0xff]
        %v1848 = vld [vmem:[#allocation5 + $0x68] sm:$0xff]
        %v1849 = vld [vmem:[#allocation5 + $0x70] sm:$0xff]
        %v1850 = vld [vmem:[#allocation5 + $0x78] sm:$0xff]
        %1851 = vmatpush.msra.mxu0 %v902
        %1852 = vmatpush.msra.mxu0 %v899
        %1853 = vmatpush.msra.mxu0 %v896
        %1854 = vmatpush.msra.mxu0 %v893
        %1855 = vmatpush.msra.mxu0 %v890
        %1856 = vmatpush.msra.mxu0 %v887
        %1857 = vmatpush.msra.mxu0 %v884
        %1858 = vmatpush.msra.mxu0 %v881
        %1859 = vmatpush.msra.mxu0 %v878
        %1860 = vmatpush.msra.mxu0 %v875
        %1861 = vmatpush.msra.mxu0 %v872
        %1862 = vmatpush.msra.mxu0 %v869
        %1863 = vmatpush.msra.mxu0 %v866
        %1864 = vmatpush.msra.mxu0 %v863
        %1865 = vmatpush.msra.mxu0 %v860
        %1866 = vmatpush.msra.mxu0 %v857
        %1867 = vmatmul.f32.gmra.mxu0 %v1499
        %v1868 = vpop.f32.mrf.mxu0
        %v1869 = vadd.f32 0.0, %v1868
        %1870 = vmatmul.f32.gmra.mxu0 %v1500
        %v1871 = vpop.f32.mrf.mxu0
        %v1872 = vadd.f32 0.0, %v1871
        %1873 = vmatmul.f32.gmra.mxu0 %v1501
        %v1874 = vpop.f32.mrf.mxu0
        %v1875 = vadd.f32 0.0, %v1874
        %1876 = vmatmul.f32.gmra.mxu0 %v1502
        %v1877 = vpop.f32.mrf.mxu0
        %v1878 = vadd.f32 0.0, %v1877
        %1879 = vmatmul.f32.gmra.mxu0 %v1503
        %v1880 = vpop.f32.mrf.mxu0
        %v1881 = vadd.f32 0.0, %v1880
        %1882 = vmatmul.f32.gmra.mxu0 %v1504
        %v1883 = vpop.f32.mrf.mxu0
        %v1884 = vadd.f32 0.0, %v1883
        %1885 = vmatmul.f32.gmra.mxu0 %v1505
        %v1886 = vpop.f32.mrf.mxu0
        %v1887 = vadd.f32 0.0, %v1886
        %1888 = vmatmul.f32.gmra.mxu0 %v1506
        %v1889 = vpop.f32.mrf.mxu0
        %v1890 = vadd.f32 0.0, %v1889
        %1891 = vmatmul.f32.gmra.mxu0 %v1507
        %v1892 = vpop.f32.mrf.mxu0
        %v1893 = vadd.f32 0.0, %v1892
        %1894 = vmatmul.f32.gmra.mxu0 %v1508
        %v1895 = vpop.f32.mrf.mxu0
        %v1896 = vadd.f32 0.0, %v1895
        %1897 = vmatmul.f32.gmra.mxu0 %v1509
        %v1898 = vpop.f32.mrf.mxu0
        %v1899 = vadd.f32 0.0, %v1898
        %1900 = vmatmul.f32.gmra.mxu0 %v1510
        %v1901 = vpop.f32.mrf.mxu0
        %v1902 = vadd.f32 0.0, %v1901
        %1903 = vmatmul.f32.gmra.mxu0 %v1511
        %v1904 = vpop.f32.mrf.mxu0
        %v1905 = vadd.f32 0.0, %v1904
        %1906 = vmatmul.f32.gmra.mxu0 %v1512
        %v1907 = vpop.f32.mrf.mxu0
        %v1908 = vadd.f32 0.0, %v1907
        %1909 = vmatmul.f32.gmra.mxu0 %v1513
        %v1910 = vpop.f32.mrf.mxu0
        %v1911 = vadd.f32 0.0, %v1910
        %1912 = vmatmul.f32.gmra.mxu0 %v1514
        %v1913 = vpop.f32.mrf.mxu0
        %v1914 = vadd.f32 0.0, %v1913
        %1915 = vdwg.mxu0
        %v1916 = vadd.f32 %v1835, %v1869
        %v1917 = vadd.f32 %v1836, %v1872
        %v1918 = vadd.f32 %v1837, %v1875
        %v1919 = vadd.f32 %v1838, %v1878
        %v1920 = vadd.f32 %v1839, %v1881
        %v1921 = vadd.f32 %v1840, %v1884
        %v1922 = vadd.f32 %v1841, %v1887
        %v1923 = vadd.f32 %v1842, %v1890
        %v1924 = vadd.f32 %v1843, %v1893
        %v1925 = vadd.f32 %v1844, %v1896
        %v1926 = vadd.f32 %v1845, %v1899
        %v1927 = vadd.f32 %v1846, %v1902
        %v1928 = vadd.f32 %v1847, %v1905
        %v1929 = vadd.f32 %v1848, %v1908
        %v1930 = vadd.f32 %v1849, %v1911
        %v1931 = vadd.f32 %v1850, %v1914
        %1932 = vst [vmem:[#allocation5] sm:$0xff] %v1916
        %1933 = vst [vmem:[#allocation5 + $0x8] sm:$0xff] %v1917
        %1934 = vst [vmem:[#allocation5 + $0x10] sm:$0xff] %v1918
        %1935 = vst [vmem:[#allocation5 + $0x18] sm:$0xff] %v1919
        %1936 = vst [vmem:[#allocation5 + $0x20] sm:$0xff] %v1920
        %1937 = vst [vmem:[#allocation5 + $0x28] sm:$0xff] %v1921
        %1938 = vst [vmem:[#allocation5 + $0x30] sm:$0xff] %v1922
        %1939 = vst [vmem:[#allocation5 + $0x38] sm:$0xff] %v1923
        %1940 = vst [vmem:[#allocation5 + $0x40] sm:$0xff] %v1924
        %1941 = vst [vmem:[#allocation5 + $0x48] sm:$0xff] %v1925
        %1942 = vst [vmem:[#allocation5 + $0x50] sm:$0xff] %v1926
        %1943 = vst [vmem:[#allocation5 + $0x58] sm:$0xff] %v1927
        %1944 = vst [vmem:[#allocation5 + $0x60] sm:$0xff] %v1928
        %1945 = vst [vmem:[#allocation5 + $0x68] sm:$0xff] %v1929
        %1946 = vst [vmem:[#allocation5 + $0x70] sm:$0xff] %v1930
        %1947 = vst [vmem:[#allocation5 + $0x78] sm:$0xff] %v1931
        %v1948 = vld [vmem:[#allocation6] sm:$0xff]
        %v1949 = vld [vmem:[#allocation6 + $0x8] sm:$0xff]
        %v1950 = vld [vmem:[#allocation6 + $0x10] sm:$0xff]
        %v1951 = vld [vmem:[#allocation6 + $0x18] sm:$0xff]
        %v1952 = vld [vmem:[#allocation6 + $0x20] sm:$0xff]
        %v1953 = vld [vmem:[#allocation6 + $0x28] sm:$0xff]
        %v1954 = vld [vmem:[#allocation6 + $0x30] sm:$0xff]
        %v1955 = vld [vmem:[#allocation6 + $0x38] sm:$0xff]
        %v1956 = vld [vmem:[#allocation6 + $0x40] sm:$0xff]
        %v1957 = vld [vmem:[#allocation6 + $0x48] sm:$0xff]
        %v1958 = vld [vmem:[#allocation6 + $0x50] sm:$0xff]
        %v1959 = vld [vmem:[#allocation6 + $0x58] sm:$0xff]
        %v1960 = vld [vmem:[#allocation6 + $0x60] sm:$0xff]
        %v1961 = vld [vmem:[#allocation6 + $0x68] sm:$0xff]
        %v1962 = vld [vmem:[#allocation6 + $0x70] sm:$0xff]
        %v1963 = vld [vmem:[#allocation6 + $0x78] sm:$0xff]
        %1964 = vmatpush.msra.mxu0 %v983
        %1965 = vmatpush.msra.mxu0 %v980
        %1966 = vmatpush.msra.mxu0 %v977
        %1967 = vmatpush.msra.mxu0 %v974
        %1968 = vmatpush.msra.mxu0 %v971
        %1969 = vmatpush.msra.mxu0 %v968
        %1970 = vmatpush.msra.mxu0 %v965
        %1971 = vmatpush.msra.mxu0 %v962
        %1972 = vmatpush.msra.mxu0 %v959
        %1973 = vmatpush.msra.mxu0 %v956
        %1974 = vmatpush.msra.mxu0 %v953
        %1975 = vmatpush.msra.mxu0 %v950
        %1976 = vmatpush.msra.mxu0 %v947
        %1977 = vmatpush.msra.mxu0 %v944
        %1978 = vmatpush.msra.mxu0 %v941
        %1979 = vmatpush.msra.mxu0 %v938
        %1980 = vmatmul.f32.gmra.mxu0 %v1819
        %v1981 = vpop.f32.mrf.mxu0
        %v1982 = vadd.f32 0.0, %v1981
        %1983 = vmatmul.f32.gmra.mxu0 %v1820
        %v1984 = vpop.f32.mrf.mxu0
        %v1985 = vadd.f32 0.0, %v1984
        %1986 = vmatmul.f32.gmra.mxu0 %v1821
        %v1987 = vpop.f32.mrf.mxu0
        %v1988 = vadd.f32 0.0, %v1987
        %1989 = vmatmul.f32.gmra.mxu0 %v1822
        %v1990 = vpop.f32.mrf.mxu0
        %v1991 = vadd.f32 0.0, %v1990
        %1992 = vmatmul.f32.gmra.mxu0 %v1823
        %v1993 = vpop.f32.mrf.mxu0
        %v1994 = vadd.f32 0.0, %v1993
        %1995 = vmatmul.f32.gmra.mxu0 %v1824
        %v1996 = vpop.f32.mrf.mxu0
        %v1997 = vadd.f32 0.0, %v1996
        %1998 = vmatmul.f32.gmra.mxu0 %v1825
        %v1999 = vpop.f32.mrf.mxu0
        %v2000 = vadd.f32 0.0, %v1999
        %2001 = vmatmul.f32.gmra.mxu0 %v1826
        %v2002 = vpop.f32.mrf.mxu0
        %v2003 = vadd.f32 0.0, %v2002
        %2004 = vmatmul.f32.gmra.mxu0 %v1827
        %v2005 = vpop.f32.mrf.mxu0
        %v2006 = vadd.f32 0.0, %v2005
        %2007 = vmatmul.f32.gmra.mxu0 %v1828
        %v2008 = vpop.f32.mrf.mxu0
        %v2009 = vadd.f32 0.0, %v2008
        %2010 = vmatmul.f32.gmra.mxu0 %v1829
        %v2011 = vpop.f32.mrf.mxu0
        %v2012 = vadd.f32 0.0, %v2011
        %2013 = vmatmul.f32.gmra.mxu0 %v1830
        %v2014 = vpop.f32.mrf.mxu0
        %v2015 = vadd.f32 0.0, %v2014
        %2016 = vmatmul.f32.gmra.mxu0 %v1831
        %v2017 = vpop.f32.mrf.mxu0
        %v2018 = vadd.f32 0.0, %v2017
        %2019 = vmatmul.f32.gmra.mxu0 %v1832
        %v2020 = vpop.f32.mrf.mxu0
        %v2021 = vadd.f32 0.0, %v2020
        %2022 = vmatmul.f32.gmra.mxu0 %v1833
        %v2023 = vpop.f32.mrf.mxu0
        %v2024 = vadd.f32 0.0, %v2023
        %2025 = vmatmul.f32.gmra.mxu0 %v1834
        %v2026 = vpop.f32.mrf.mxu0
        %v2027 = vadd.f32 0.0, %v2026
        %2028 = vdwg.mxu0
        %v2029 = vadd.f32 %v1948, %v1982
        %v2030 = vadd.f32 %v1949, %v1985
        %v2031 = vadd.f32 %v1950, %v1988
        %v2032 = vadd.f32 %v1951, %v1991
        %v2033 = vadd.f32 %v1952, %v1994
        %v2034 = vadd.f32 %v1953, %v1997
        %v2035 = vadd.f32 %v1954, %v2000
        %v2036 = vadd.f32 %v1955, %v2003
        %v2037 = vadd.f32 %v1956, %v2006
        %v2038 = vadd.f32 %v1957, %v2009
        %v2039 = vadd.f32 %v1958, %v2012
        %v2040 = vadd.f32 %v1959, %v2015
        %v2041 = vadd.f32 %v1960, %v2018
        %v2042 = vadd.f32 %v1961, %v2021
        %v2043 = vadd.f32 %v1962, %v2024
        %v2044 = vadd.f32 %v1963, %v2027
        %2045 = vst [vmem:[#allocation6] sm:$0xff] %v2029
        %2046 = vst [vmem:[#allocation6 + $0x8] sm:$0xff] %v2030
        %2047 = vst [vmem:[#allocation6 + $0x10] sm:$0xff] %v2031
        %2048 = vst [vmem:[#allocation6 + $0x18] sm:$0xff] %v2032
        %2049 = vst [vmem:[#allocation6 + $0x20] sm:$0xff] %v2033
        %2050 = vst [vmem:[#allocation6 + $0x28] sm:$0xff] %v2034
        %2051 = vst [vmem:[#allocation6 + $0x30] sm:$0xff] %v2035
        %2052 = vst [vmem:[#allocation6 + $0x38] sm:$0xff] %v2036
        %2053 = vst [vmem:[#allocation6 + $0x40] sm:$0xff] %v2037
        %2054 = vst [vmem:[#allocation6 + $0x48] sm:$0xff] %v2038
        %2055 = vst [vmem:[#allocation6 + $0x50] sm:$0xff] %v2039
        %2056 = vst [vmem:[#allocation6 + $0x58] sm:$0xff] %v2040
        %2057 = vst [vmem:[#allocation6 + $0x60] sm:$0xff] %v2041
        %2058 = vst [vmem:[#allocation6 + $0x68] sm:$0xff] %v2042
        %2059 = vst [vmem:[#allocation6 + $0x70] sm:$0xff] %v2043
        %2060 = vst [vmem:[#allocation6 + $0x78] sm:$0xff] %v2044
        %p2061 = scmp.eq.s32.totalorder %s40, 1
        // Predicated region
        $region73: #{tpu_custom_call.1} parent=43 // pred_check
          %p2062 = pneg %p2061
        $region74: #{tpu_custom_call.1} parent=43 // pred_check_branch
          %2064 = sbr.rel (%p2062) target = $region76
        $region75: #{tpu_custom_call.1} parent=43 // pred_region
          %v2065 = vld [vmem:[#allocation4] sm:$0xff]
          %v2066 = vld [vmem:[#allocation4 + $0x8] sm:$0xff]
          %v2067 = vld [vmem:[#allocation4 + $0x10] sm:$0xff]
          %v2068 = vld [vmem:[#allocation4 + $0x18] sm:$0xff]
          %v2069 = vld [vmem:[#allocation4 + $0x20] sm:$0xff]
          %v2070 = vld [vmem:[#allocation4 + $0x28] sm:$0xff]
          %v2071 = vld [vmem:[#allocation4 + $0x30] sm:$0xff]
          %v2072 = vld [vmem:[#allocation4 + $0x38] sm:$0xff]
          %v2073 = vld [vmem:[#allocation4 + $0x40] sm:$0xff]
          %v2074 = vld [vmem:[#allocation4 + $0x48] sm:$0xff]
          %v2075 = vld [vmem:[#allocation4 + $0x50] sm:$0xff]
          %v2076 = vld [vmem:[#allocation4 + $0x58] sm:$0xff]
          %v2077 = vld [vmem:[#allocation4 + $0x60] sm:$0xff]
          %v2078 = vld [vmem:[#allocation4 + $0x68] sm:$0xff]
          %v2079 = vld [vmem:[#allocation4 + $0x70] sm:$0xff]
          %v2080 = vld [vmem:[#allocation4 + $0x78] sm:$0xff]
          %v2081 = vld [vmem:[#allocation6] sm:$0xff]
          %v2082 = vld [vmem:[#allocation6 + $0x8] sm:$0xff]
          %v2083 = vld [vmem:[#allocation6 + $0x10] sm:$0xff]
          %v2084 = vld [vmem:[#allocation6 + $0x18] sm:$0xff]
          %v2085 = vld [vmem:[#allocation6 + $0x20] sm:$0xff]
          %v2086 = vld [vmem:[#allocation6 + $0x28] sm:$0xff]
          %v2087 = vld [vmem:[#allocation6 + $0x30] sm:$0xff]
          %v2088 = vld [vmem:[#allocation6 + $0x38] sm:$0xff]
          %v2089 = vld [vmem:[#allocation6 + $0x40] sm:$0xff]
          %v2090 = vld [vmem:[#allocation6 + $0x48] sm:$0xff]
          %v2091 = vld [vmem:[#allocation6 + $0x50] sm:$0xff]
          %v2092 = vld [vmem:[#allocation6 + $0x58] sm:$0xff]
          %v2093 = vld [vmem:[#allocation6 + $0x60] sm:$0xff]
          %v2094 = vld [vmem:[#allocation6 + $0x68] sm:$0xff]
          %v2095 = vld [vmem:[#allocation6 + $0x70] sm:$0xff]
          %v2096 = vld [vmem:[#allocation6 + $0x78] sm:$0xff]
          %v2097 = vadd.f32 %v2065, %v2081
          %v2098 = vadd.f32 %v2066, %v2082
          %v2099 = vadd.f32 %v2067, %v2083
          %v2100 = vadd.f32 %v2068, %v2084
          %v2101 = vadd.f32 %v2069, %v2085
          %v2102 = vadd.f32 %v2070, %v2086
          %v2103 = vadd.f32 %v2071, %v2087
          %v2104 = vadd.f32 %v2072, %v2088
          %v2105 = vadd.f32 %v2073, %v2089
          %v2106 = vadd.f32 %v2074, %v2090
          %v2107 = vadd.f32 %v2075, %v2091
          %v2108 = vadd.f32 %v2076, %v2092
          %v2109 = vadd.f32 %v2077, %v2093
          %v2110 = vadd.f32 %v2078, %v2094
          %v2111 = vadd.f32 %v2079, %v2095
          %v2112 = vadd.f32 %v2080, %v2096
          %v2113 = vld [vmem:[#allocation5] sm:$0xff]
          %v2114 = vld [vmem:[#allocation5 + $0x8] sm:$0xff]
          %v2115 = vld [vmem:[#allocation5 + $0x10] sm:$0xff]
          %v2116 = vld [vmem:[#allocation5 + $0x18] sm:$0xff]
          %v2117 = vld [vmem:[#allocation5 + $0x20] sm:$0xff]
          %v2118 = vld [vmem:[#allocation5 + $0x28] sm:$0xff]
          %v2119 = vld [vmem:[#allocation5 + $0x30] sm:$0xff]
          %v2120 = vld [vmem:[#allocation5 + $0x38] sm:$0xff]
          %v2121 = vld [vmem:[#allocation5 + $0x40] sm:$0xff]
          %v2122 = vld [vmem:[#allocation5 + $0x48] sm:$0xff]
          %v2123 = vld [vmem:[#allocation5 + $0x50] sm:$0xff]
          %v2124 = vld [vmem:[#allocation5 + $0x58] sm:$0xff]
          %v2125 = vld [vmem:[#allocation5 + $0x60] sm:$0xff]
          %v2126 = vld [vmem:[#allocation5 + $0x68] sm:$0xff]
          %v2127 = vld [vmem:[#allocation5 + $0x70] sm:$0xff]
          %v2128 = vld [vmem:[#allocation5 + $0x78] sm:$0xff]
          %v2129 = vsub.f32 %v2113, %v2081
          %v2130 = vsub.f32 %v2114, %v2082
          %v2131 = vsub.f32 %v2115, %v2083
          %v2132 = vsub.f32 %v2116, %v2084
          %v2133 = vsub.f32 %v2117, %v2085
          %v2134 = vsub.f32 %v2118, %v2086
          %v2135 = vsub.f32 %v2119, %v2087
          %v2136 = vsub.f32 %v2120, %v2088
          %v2137 = vsub.f32 %v2121, %v2089
          %v2138 = vsub.f32 %v2122, %v2090
          %v2139 = vsub.f32 %v2123, %v2091
          %v2140 = vsub.f32 %v2124, %v2092
          %v2141 = vsub.f32 %v2125, %v2093
          %v2142 = vsub.f32 %v2126, %v2094
          %v2143 = vsub.f32 %v2127, %v2095
          %v2144 = vsub.f32 %v2128, %v2096
          %2145 = vst [vmem:[%s451] sm:$0xff] %v2129
          %2146 = vst [vmem:[%s451 + $0x8] sm:$0xff] %v2130
          %2147 = vst [vmem:[%s451 + $0x10] sm:$0xff] %v2131
          %2148 = vst [vmem:[%s451 + $0x18] sm:$0xff] %v2132
          %2149 = vst [vmem:[%s451 + $0x20] sm:$0xff] %v2133
          %2150 = vst [vmem:[%s451 + $0x28] sm:$0xff] %v2134
          %2151 = vst [vmem:[%s451 + $0x30] sm:$0xff] %v2135
          %2152 = vst [vmem:[%s451 + $0x38] sm:$0xff] %v2136
          %2153 = vst [vmem:[%s451 + $0x40] sm:$0xff] %v2137
          %2154 = vst [vmem:[%s451 + $0x48] sm:$0xff] %v2138
          %2155 = vst [vmem:[%s451 + $0x50] sm:$0xff] %v2139
          %2156 = vst [vmem:[%s451 + $0x58] sm:$0xff] %v2140
          %2157 = vst [vmem:[%s451 + $0x60] sm:$0xff] %v2141
          %2158 = vst [vmem:[%s451 + $0x68] sm:$0xff] %v2142
          %2159 = vst [vmem:[%s451 + $0x70] sm:$0xff] %v2143
          %2160 = vst [vmem:[%s451 + $0x78] sm:$0xff] %v2144
          %2161 = vst [vmem:[%s458] sm:$0xff] %v2097
          %2162 = vst [vmem:[%s458 + $0x8] sm:$0xff] %v2098
          %2163 = vst [vmem:[%s458 + $0x10] sm:$0xff] %v2099
          %2164 = vst [vmem:[%s458 + $0x18] sm:$0xff] %v2100
          %2165 = vst [vmem:[%s458 + $0x20] sm:$0xff] %v2101
          %2166 = vst [vmem:[%s458 + $0x28] sm:$0xff] %v2102
          %2167 = vst [vmem:[%s458 + $0x30] sm:$0xff] %v2103
          %2168 = vst [vmem:[%s458 + $0x38] sm:$0xff] %v2104
          %2169 = vst [vmem:[%s458 + $0x40] sm:$0xff] %v2105
          %2170 = vst [vmem:[%s458 + $0x48] sm:$0xff] %v2106
          %2171 = vst [vmem:[%s458 + $0x50] sm:$0xff] %v2107
          %2172 = vst [vmem:[%s458 + $0x58] sm:$0xff] %v2108
          %2173 = vst [vmem:[%s458 + $0x60] sm:$0xff] %v2109
          %2174 = vst [vmem:[%s458 + $0x68] sm:$0xff] %v2110
          %2175 = vst [vmem:[%s458 + $0x70] sm:$0xff] %v2111
          %2176 = vst [vmem:[%s458 + $0x78] sm:$0xff] %v2112
        $region76: #{tpu_custom_call.1} parent=43 // pred_fallthru
          _
        %s2177 = sand.u32 %s198, 1
        %s2178 = scalar_lea.sflag [#allocation9], %s2177
        %s2179 = sand.u32 %s198, 1
        %s2180 = smul.addr %s2179, 128
        %s2181 = scalar_lea.vmem [#allocation18], %s2180
        %s2182 = sand.u32 %s224, 1
        %s2183 = scalar_lea.sflag [#allocation20], %s2182
        %s2184 = sand.u32 %s224, 1
        %s2185 = smul.addr %s2184, 128
        %s2186 = scalar_lea.vmem [#allocation19], %s2185
        // Predicated region
        $region77: #{tpu_custom_call.1} parent=43 // pred_check
          %p2187 = pneg %p208
        $region78: #{tpu_custom_call.1} parent=43 // pred_check_branch
          %2189 = sbr.rel (%p2187) target = $region80
        $region79: #{tpu_custom_call.1} parent=43 // pred_region
          %s2190 = smul.u32 16, %s39
          %2192 = vsyncadd %s2178, 0
          %s2193 = smul.addr %s2190, 8
          %s2194 = scalar_lea.hbm %s6, %s2193
          %s2195 = sshll.u32 %s2181, 4
          %s2196 = int_to_ptr.vmem [resolvable:$true] %s2195
          %s2197 = sshll.u32 %s2194, 4
          %s2198 = int_to_ptr.hbm [resolvable:$true] %s2197
          %2203 = dma.vmem_to_hbm [thread:$0]  %s2196, 2048, %s2198, %s2178, 128, 128, 8
        $region80: #{tpu_custom_call.1} parent=43 // pred_fallthru
          _
        // Predicated region
        $region81: #{tpu_custom_call.1} parent=43 // pred_check
          %p2204 = pneg %p234
        $region82: #{tpu_custom_call.1} parent=43 // pred_check_branch
          %2206 = sbr.rel (%p2204) target = $region84
        $region83: #{tpu_custom_call.1} parent=43 // pred_region
          %s2207 = smul.u32 16, %s39
          %2209 = vsyncadd %s2183, 0
          %s2210 = smul.addr %s2207, 8
          %s2211 = scalar_lea.hbm %s7, %s2210
          %s2212 = sshll.u32 %s2186, 4
          %s2213 = int_to_ptr.vmem [resolvable:$true] %s2212
          %s2214 = sshll.u32 %s2211, 4
          %s2215 = int_to_ptr.hbm [resolvable:$true] %s2214
          %2220 = dma.vmem_to_hbm [thread:$0]  %s2213, 2048, %s2215, %s2183, 128, 128, 8
        $region84: #{tpu_custom_call.1} parent=43 // pred_fallthru
          _
      $region44: #{tpu_custom_call.1} parent=5 // pred_fallthru
        _
      %p2221 = scmp.le.s32.totalorder 2, %s30
      // Predicated region
      $region85: #{tpu_custom_call.1} parent=5 // pred_check
        %p2222 = pneg %p2221
      $region86: #{tpu_custom_call.1} parent=5 // pred_check_branch
        %2224 = sbr.rel (%p2222) target = $region88
      $region87: #{tpu_custom_call.1} parent=5 // pred_region
        %s2225 = ssub.s32 %s30, 2
        // Predicated region
        $region89: #{tpu_custom_call.1} parent=87 // pred_check
          %p2226 = pneg %p214
        $region90: #{tpu_custom_call.1} parent=87 // pred_check_branch
          %2228 = sbr.rel (%p2226) target = $region92
        $region91: #{tpu_custom_call.1} parent=87 // pred_region
          %s2229 = sand.u32 %s199, 1
          %s2230 = scalar_lea.sflag [#allocation9], %s2229
          %s2231 = sand.u32 %s199, 1
          %s2232 = smul.addr %s2231, 128
          %s2233 = scalar_lea.vmem [#allocation18], %s2232
          %2235 = dma.done %s2230, 2048
        $region92: #{tpu_custom_call.1} parent=87 // pred_fallthru
          _
        // Predicated region
        $region93: #{tpu_custom_call.1} parent=87 // pred_check
          %p2236 = pneg %p240
        $region94: #{tpu_custom_call.1} parent=87 // pred_check_branch
          %2238 = sbr.rel (%p2236) target = $region96
        $region95: #{tpu_custom_call.1} parent=87 // pred_region
          %s2239 = sand.u32 %s225, 1
          %s2240 = scalar_lea.sflag [#allocation20], %s2239
          %s2241 = sand.u32 %s225, 1
          %s2242 = smul.addr %s2241, 128
          %s2243 = scalar_lea.vmem [#allocation19], %s2242
          %2245 = dma.done %s2240, 2048
        $region96: #{tpu_custom_call.1} parent=87 // pred_fallthru
          _
      $region88: #{tpu_custom_call.1} parent=5 // pred_fallthru
        _
    $region6: #{tpu_custom_call.1} parent=1 // loop_footer
      %s34 = sadd.s32 1, %s30
    $region7: #{tpu_custom_call.1} parent=1 // loop_footer_branch
      %29 = sbr.rel target = $region3
    $region8: #{tpu_custom_call.1} parent=1 // loop_exit
      _
    %2246 = vsyncpa [#allocation8], 1
    %s2247 = scalar_lea.sflag [#allocation8], 1
    %2248 = vsyncpa %s2247, 1
    %2249 = vsyncpa [#allocation11], 1
    %s2250 = scalar_lea.sflag [#allocation11], 1
    %2251 = vsyncpa %s2250, 1
    %2252 = vsyncpa [#allocation14], 1
    %2253 = vsyncpa [#allocation17], 1
    %s2254 = scalar_lea.sflag [#allocation17], 1
    %2255 = vsyncpa %s2254, 1
    %2256 = vsyncpa [#allocation9], 1
    %s2257 = scalar_lea.sflag [#allocation9], 1
    %2258 = vsyncpa %s2257, 1
    %2259 = vsyncpa [#allocation20], 1
    %s2260 = scalar_lea.sflag [#allocation20], 1
    %2261 = vsyncpa %s2260, 1

</llo_original>
